<compile_context>
chip_gen: v6e
topology: v6e:2x2x1
jax: 0.10.0
libtpu: 0.0.40
codegen_flags: <defaults>
</compile_context>

<pallas_src>
import functools
import math

import jax
import jax.numpy as jnp
from jax.experimental import pallas as pl
from jax.experimental.pallas import tpu as pltpu


# ----------------------------- Pallas kernel ------------------------------ #
def _mean_teacher_conv_kernel(x_ref, w1_ref, b1_ref, w2_ref, b2_ref,
                              t_ref, s_ref, *, wp):
    """Fused teacher+student (3x3 conv -> ReLU -> 1x1 conv) for one image.

    x_ref : [C, P]        zero-padded, row-flattened CHW image (compute dtype)
    w1_ref: [9, 2H, C]    fused 3x3 tap weights (rows: teacher ++ student)
    b1_ref: [2H, 1]       fused conv1 bias (f32)
    w2_ref: [2K, 2H]      block-diagonal fused 1x1 conv weights
    b2_ref: [2K, 1]       fused conv2 bias (f32)
    t_ref : [K, L]        teacher heatmap raster, L = H*Wp (junk cols per row)
    s_ref : [K, L]        student heatmap raster
    wp    : padded row width Wp (static)
    """
    k_out, l_out = t_ref.shape
    f2 = w1_ref.shape[1]

    x = x_ref[...]                                    # read the image once
    acc = jnp.zeros((f2, l_out), jnp.float32)

    # 3x3 conv as 9 shifted accumulating matmuls: for tap (dh, dw) the input
    # needed at output raster position p is x_flat[:, p + dh*Wp + dw].
    for idx in range(9):
        dh, dw = divmod(idx, 3)
        off = dh * wp + dw
        win = x[:, off:off + l_out]                               # [C, L]
        acc = acc + jnp.dot(w1_ref[idx], win,
                            preferred_element_type=jnp.float32)   # [2H, L]

    hid = jnp.maximum(acc + b1_ref[...], 0.0).astype(x.dtype)     # [2H, L]
    out = jnp.dot(w2_ref[...], hid,
                  preferred_element_type=jnp.float32) + b2_ref[...]  # [2K, L]

    t_ref[...] = out[:k_out].astype(t_ref.dtype)     # teacher channels
    s_ref[...] = out[k_out:].astype(s_ref.dtype)     # student channels


# ------------------------------- wrapper ----------------------------------- #
def _padded_row_width(h, w):
    """Smallest row width >= w+2 such that h*width % 128 == 0 (lane-dense
    output stores); falls back to w+2 if alignment would waste too much."""
    wp_min = w + 2
    step = 128 // math.gcd(h, 128)
    wp = ((wp_min + step - 1) // step) * step
    return wp if wp <= wp_min + 32 else wp_min


@functools.partial(jax.jit, static_argnames=("compute_dtype",))
def mean_teacher_forward(x_nchw, params, *, compute_dtype=jnp.bfloat16):
    """Returns (teacher_heatmap, student_heatmap), both [N, K, H, W] f32."""
    tw1, tb1, tw2, tb2, sw1, sb1, sw2, sb2 = params
    n, c, h, w = x_nchw.shape
    hid = tw1.shape[0]
    k = tw2.shape[0]
    wp = _padded_row_width(h, w)     # padded row width (lane-friendly)
    l_out = h * wp                   # output raster length per image
    p_pad = (h + 3) * wp             # extra bottom row keeps shifted slices in-bounds

    # ---- fuse teacher + student parameters (trace-time glue, tiny) ----
    # conv1: [HID, C, 3, 3] (OIHW) -> per-tap transposed [9, 2*HID, C]
    w1_f = jnp.concatenate([tw1, sw1], axis=0)                       # [2H, C, 3, 3]
    w1_f = jnp.transpose(w1_f, (2, 3, 0, 1)).reshape(9, 2 * hid, c)  # idx = kh*3+kw
    w1_f = w1_f.astype(compute_dtype)
    b1_f = jnp.concatenate([tb1, sb1]).reshape(2 * hid, 1).astype(jnp.float32)
    # conv2: block-diagonal so teacher hidden only feeds teacher outputs.
    w2_f = jnp.zeros((2 * k, 2 * hid), jnp.float32)
    w2_f = w2_f.at[:k, :hid].set(tw2).at[k:, hid:].set(sw2).astype(compute_dtype)
    b2_f = jnp.concatenate([tb2, sb2]).reshape(2 * k, 1).astype(jnp.float32)

    # ---- input: keep NCHW, zero-pad spatially, flatten rows (read once) ----
    xp = jnp.pad(x_nchw.astype(compute_dtype),
                 ((0, 0), (0, 0), (1, 2), (1, wp - w - 1)))   # [N, C, H+3, Wp]
    xf = xp.reshape(n, c, p_pad)                              # [N, C, P]

    def const(shape):
        return pl.BlockSpec(shape, lambda b: (0,) * len(shape))

    out_sds = jax.ShapeDtypeStruct((n, k, l_out), jnp.float32)

    t_raw, s_raw = pl.pallas_call(
        functools.partial(_mean_teacher_conv_kernel, wp=wp),
        out_shape=(out_sds, out_sds),
        grid=(n,),                                           # one image per step
        in_specs=[
            pl.BlockSpec((None, c, p_pad), lambda b: (b, 0, 0)),   # image b
            const((9, 2 * hid, c)),     # weights/biases: constant index_map ->
            const((2 * hid, 1)),        # VMEM-resident across the whole grid
            const((2 * k, 2 * hid)),
            const((2 * k, 1)),
        ],
        out_specs=(
            pl.BlockSpec((None, k, l_out), lambda b: (b, 0, 0)),
            pl.BlockSpec((None, k, l_out), lambda b: (b, 0, 0)),
        ),
        compiler_params=pltpu.CompilerParams(
            dimension_semantics=("parallel",),     # shard batch across cores
        ),
    )(xf, w1_f, b1_f, w2_f, b2_f)

    # Drop the junk columns per raster row; result is already channel-major
    # (NCHW), so no transpose pass is needed.
    t_hm = t_raw.reshape(n, k, h, wp)[:, :, :, :w]
    s_hm = s_raw.reshape(n, k, h, wp)[:, :, :, :w]
    return t_hm, s_hm


# ---------------------------- parameter setup ------------------------------ #
def init_params(key, c_in=4, hidden=32, k_out=8):
    """Deterministic student params; teacher params are an exact copy
    (mirrors the t_param.data.copy_(s_param.data) loop in __init__)."""
    k1, k2, k3, k4 = jax.random.split(key, 4)
    sw1 = jax.random.normal(k1, (hidden, c_in, 3, 3), jnp.float32) * 0.05  # OIHW
    sb1 = jax.random.normal(k2, (hidden,), jnp.float32) * 0.05
    sw2 = jax.random.normal(k3, (k_out, hidden), jnp.float32) * 0.05       # 1x1 conv
    sb2 = jax.random.normal(k4, (k_out,), jnp.float32) * 0.05
    # teacher <- copy of student (detach / no-grad is irrelevant for forward)
    tw1, tb1, tw2, tb2 = sw1, sb1, sw2, sb2
    return (tw1, tb1, tw2, tb2, sw1, sb1, sw2, sb2)


# --------------------------- pure-JAX reference ----------------------------- #
def _ref_forward(x, w1, b1, w2, b2):
    """f32 reference for one branch: conv3x3(pad=1) -> ReLU -> conv1x1."""
    dn = ("NCHW", "OIHW", "NCHW")
    y = jax.lax.conv_general_dilated(x, w1, (1, 1), "SAME", dimension_numbers=dn)
    y = jnp.maximum(y + b1[None, :, None, None], 0.0)
    z = jax.lax.conv_general_dilated(y, w2[:, :, None, None], (1, 1), "SAME",
                                     dimension_numbers=dn)
    return z + b2[None, :, None, None]


# TODO(synk): predict / predict_on_input_image / _update_teacher_ema are
# training-loop / decoding utilities with no kernel-level forward semantics;
# only forward() is implemented here.

if __name__ == "__main__":
    key = jax.random.PRNGKey(0)
    kx, kp = jax.random.split(key)

    N, C, H, W = 2, 4, 16, 16
    HIDDEN, K = 32, 8
    x = jax.random.normal(kx, (N, C, H, W), jnp.float32)
    params = init_params(kp, c_in=C, hidden=HIDDEN, k_out=K)

    t_hm, s_hm = mean_teacher_forward(x, params)
    jax.block_until_ready((t_hm, s_hm))

    assert t_hm.shape == (N, K, H, W) and s_hm.shape == (N, K, H, W)
    # Teacher was initialized as a copy of the student, so outputs must match.
    assert bool(jnp.allclose(t_hm, s_hm))
    # Numerics vs. a pure-JAX f32 conv reference (bf16 compute -> loose tol).
    sw1, sb1, sw2, sb2 = params[4:]
    ref = _ref_forward(x, sw1, sb1, sw2, sb2)
    assert bool(jnp.allclose(s_hm, ref, atol=2e-2, rtol=2e-2))
    print("KERNEL_OK")
</pallas_src>

<mosaic_0001>
module attributes {stable_mosaic.version = 11 : i64} {
  func.func @_mean_teacher_conv_kernel(%arg0: i32, %arg1: memref<1x4x456xbf16, #tpu.memory_space<vmem>>, %arg2: memref<9x64x4xbf16, #tpu.memory_space<vmem>>, %arg3: memref<64x1xf32, #tpu.memory_space<vmem>>, %arg4: memref<16x64xbf16, #tpu.memory_space<vmem>>, %arg5: memref<16x1xf32, #tpu.memory_space<vmem>>, %arg6: memref<1x8x384xf32, #tpu.memory_space<vmem>>, %arg7: memref<1x8x384xf32, #tpu.memory_space<vmem>>) attributes {dimension_semantics = [#tpu.dimension_semantics<parallel>], iteration_bounds = array<i64: 2>, scalar_prefetch = 0 : i64, scratch_operands = 0 : i64, tpu.core_type = #tpu.core_type<tc>, window_params = [{transform_indices = @transform_0, window_bounds = array<i64: 1, 4, 456>}, {pipeline_mode = #tpu.pipeline_mode<synchronous>, transform_indices = @transform_1, window_bounds = array<i64: 9, 64, 4>}, {pipeline_mode = #tpu.pipeline_mode<synchronous>, transform_indices = @transform_2, window_bounds = array<i64: 64, 1>}, {pipeline_mode = #tpu.pipeline_mode<synchronous>, transform_indices = @transform_3, window_bounds = array<i64: 16, 64>}, {pipeline_mode = #tpu.pipeline_mode<synchronous>, transform_indices = @transform_4, window_bounds = array<i64: 16, 1>}, {transform_indices = @transform_5, window_bounds = array<i64: 1, 8, 384>}, {transform_indices = @transform_6, window_bounds = array<i64: 1, 8, 384>}]} {
    %c0 = arith.constant 0 : index
    %c0_0 = arith.constant 0 : index
    %c0_1 = arith.constant 0 : index
    %0 = vector.load %arg1[%c0, %c0_0, %c0_1] : memref<1x4x456xbf16, #tpu.memory_space<vmem>>, vector<1x4x456xbf16>
    %1 = vector.shape_cast %0 : vector<1x4x456xbf16> to vector<4x456xbf16>
    %cst = arith.constant 0.000000e+00 : f32
    %2 = vector.broadcast %cst : f32 to vector<64x384xf32>
    %3 = vector.extract_strided_slice %1 {offsets = [0, 0], sizes = [4, 384], strides = [1, 1]} : vector<4x456xbf16> to vector<4x384xbf16>
    %c0_2 = arith.constant 0 : index
    %c0_3 = arith.constant 0 : index
    %c0_4 = arith.constant 0 : index
    %4 = vector.load %arg2[%c0_2, %c0_3, %c0_4] : memref<9x64x4xbf16, #tpu.memory_space<vmem>>, vector<1x64x4xbf16>
    %5 = vector.shape_cast %4 : vector<1x64x4xbf16> to vector<64x4xbf16>
    %cst_5 = arith.constant dense<0.000000e+00> : vector<64x384xf32>
    %6 = tpu.matmul %5, %3, %cst_5 {dimension_numbers = #tpu.dot_dimension_numbers<[1], [0], [0], [1], [0, 0, 1, 1], [], []>} : vector<64x4xbf16>, vector<4x384xbf16>, vector<64x384xf32> -> vector<64x384xf32>
    %7 = arith.addf %2, %6 : vector<64x384xf32>
    %8 = vector.extract_strided_slice %1 {offsets = [0, 1], sizes = [4, 384], strides = [1, 1]} : vector<4x456xbf16> to vector<4x384xbf16>
    %c1 = arith.constant 1 : index
    %c0_6 = arith.constant 0 : index
    %c0_7 = arith.constant 0 : index
    %9 = vector.load %arg2[%c1, %c0_6, %c0_7] : memref<9x64x4xbf16, #tpu.memory_space<vmem>>, vector<1x64x4xbf16>
    %10 = vector.shape_cast %9 : vector<1x64x4xbf16> to vector<64x4xbf16>
    %cst_8 = arith.constant dense<0.000000e+00> : vector<64x384xf32>
    %11 = tpu.matmul %10, %8, %cst_8 {dimension_numbers = #tpu.dot_dimension_numbers<[1], [0], [0], [1], [0, 0, 1, 1], [], []>} : vector<64x4xbf16>, vector<4x384xbf16>, vector<64x384xf32> -> vector<64x384xf32>
    %12 = arith.addf %7, %11 : vector<64x384xf32>
    %13 = vector.extract_strided_slice %1 {offsets = [0, 2], sizes = [4, 384], strides = [1, 1]} : vector<4x456xbf16> to vector<4x384xbf16>
    %c2 = arith.constant 2 : index
    %c0_9 = arith.constant 0 : index
    %c0_10 = arith.constant 0 : index
    %14 = vector.load %arg2[%c2, %c0_9, %c0_10] : memref<9x64x4xbf16, #tpu.memory_space<vmem>>, vector<1x64x4xbf16>
    %15 = vector.shape_cast %14 : vector<1x64x4xbf16> to vector<64x4xbf16>
    %cst_11 = arith.constant dense<0.000000e+00> : vector<64x384xf32>
    %16 = tpu.matmul %15, %13, %cst_11 {dimension_numbers = #tpu.dot_dimension_numbers<[1], [0], [0], [1], [0, 0, 1, 1], [], []>} : vector<64x4xbf16>, vector<4x384xbf16>, vector<64x384xf32> -> vector<64x384xf32>
    %17 = arith.addf %12, %16 : vector<64x384xf32>
    %18 = vector.extract_strided_slice %1 {offsets = [0, 24], sizes = [4, 384], strides = [1, 1]} : vector<4x456xbf16> to vector<4x384xbf16>
    %c3 = arith.constant 3 : index
    %c0_12 = arith.constant 0 : index
    %c0_13 = arith.constant 0 : index
    %19 = vector.load %arg2[%c3, %c0_12, %c0_13] : memref<9x64x4xbf16, #tpu.memory_space<vmem>>, vector<1x64x4xbf16>
    %20 = vector.shape_cast %19 : vector<1x64x4xbf16> to vector<64x4xbf16>
    %cst_14 = arith.constant dense<0.000000e+00> : vector<64x384xf32>
    %21 = tpu.matmul %20, %18, %cst_14 {dimension_numbers = #tpu.dot_dimension_numbers<[1], [0], [0], [1], [0, 0, 1, 1], [], []>} : vector<64x4xbf16>, vector<4x384xbf16>, vector<64x384xf32> -> vector<64x384xf32>
    %22 = arith.addf %17, %21 : vector<64x384xf32>
    %23 = vector.extract_strided_slice %1 {offsets = [0, 25], sizes = [4, 384], strides = [1, 1]} : vector<4x456xbf16> to vector<4x384xbf16>
    %c4 = arith.constant 4 : index
    %c0_15 = arith.constant 0 : index
    %c0_16 = arith.constant 0 : index
    %24 = vector.load %arg2[%c4, %c0_15, %c0_16] : memref<9x64x4xbf16, #tpu.memory_space<vmem>>, vector<1x64x4xbf16>
    %25 = vector.shape_cast %24 : vector<1x64x4xbf16> to vector<64x4xbf16>
    %cst_17 = arith.constant dense<0.000000e+00> : vector<64x384xf32>
    %26 = tpu.matmul %25, %23, %cst_17 {dimension_numbers = #tpu.dot_dimension_numbers<[1], [0], [0], [1], [0, 0, 1, 1], [], []>} : vector<64x4xbf16>, vector<4x384xbf16>, vector<64x384xf32> -> vector<64x384xf32>
    %27 = arith.addf %22, %26 : vector<64x384xf32>
    %28 = vector.extract_strided_slice %1 {offsets = [0, 26], sizes = [4, 384], strides = [1, 1]} : vector<4x456xbf16> to vector<4x384xbf16>
    %c5 = arith.constant 5 : index
    %c0_18 = arith.constant 0 : index
    %c0_19 = arith.constant 0 : index
    %29 = vector.load %arg2[%c5, %c0_18, %c0_19] : memref<9x64x4xbf16, #tpu.memory_space<vmem>>, vector<1x64x4xbf16>
    %30 = vector.shape_cast %29 : vector<1x64x4xbf16> to vector<64x4xbf16>
    %cst_20 = arith.constant dense<0.000000e+00> : vector<64x384xf32>
    %31 = tpu.matmul %30, %28, %cst_20 {dimension_numbers = #tpu.dot_dimension_numbers<[1], [0], [0], [1], [0, 0, 1, 1], [], []>} : vector<64x4xbf16>, vector<4x384xbf16>, vector<64x384xf32> -> vector<64x384xf32>
    %32 = arith.addf %27, %31 : vector<64x384xf32>
    %33 = vector.extract_strided_slice %1 {offsets = [0, 48], sizes = [4, 384], strides = [1, 1]} : vector<4x456xbf16> to vector<4x384xbf16>
    %c6 = arith.constant 6 : index
    %c0_21 = arith.constant 0 : index
    %c0_22 = arith.constant 0 : index
    %34 = vector.load %arg2[%c6, %c0_21, %c0_22] : memref<9x64x4xbf16, #tpu.memory_space<vmem>>, vector<1x64x4xbf16>
    %35 = vector.shape_cast %34 : vector<1x64x4xbf16> to vector<64x4xbf16>
    %cst_23 = arith.constant dense<0.000000e+00> : vector<64x384xf32>
    %36 = tpu.matmul %35, %33, %cst_23 {dimension_numbers = #tpu.dot_dimension_numbers<[1], [0], [0], [1], [0, 0, 1, 1], [], []>} : vector<64x4xbf16>, vector<4x384xbf16>, vector<64x384xf32> -> vector<64x384xf32>
    %37 = arith.addf %32, %36 : vector<64x384xf32>
    %38 = vector.extract_strided_slice %1 {offsets = [0, 49], sizes = [4, 384], strides = [1, 1]} : vector<4x456xbf16> to vector<4x384xbf16>
    %c7 = arith.constant 7 : index
    %c0_24 = arith.constant 0 : index
    %c0_25 = arith.constant 0 : index
    %39 = vector.load %arg2[%c7, %c0_24, %c0_25] : memref<9x64x4xbf16, #tpu.memory_space<vmem>>, vector<1x64x4xbf16>
    %40 = vector.shape_cast %39 : vector<1x64x4xbf16> to vector<64x4xbf16>
    %cst_26 = arith.constant dense<0.000000e+00> : vector<64x384xf32>
    %41 = tpu.matmul %40, %38, %cst_26 {dimension_numbers = #tpu.dot_dimension_numbers<[1], [0], [0], [1], [0, 0, 1, 1], [], []>} : vector<64x4xbf16>, vector<4x384xbf16>, vector<64x384xf32> -> vector<64x384xf32>
    %42 = arith.addf %37, %41 : vector<64x384xf32>
    %43 = vector.extract_strided_slice %1 {offsets = [0, 50], sizes = [4, 384], strides = [1, 1]} : vector<4x456xbf16> to vector<4x384xbf16>
    %c8 = arith.constant 8 : index
    %c0_27 = arith.constant 0 : index
    %c0_28 = arith.constant 0 : index
    %44 = vector.load %arg2[%c8, %c0_27, %c0_28] : memref<9x64x4xbf16, #tpu.memory_space<vmem>>, vector<1x64x4xbf16>
    %45 = vector.shape_cast %44 : vector<1x64x4xbf16> to vector<64x4xbf16>
    %cst_29 = arith.constant dense<0.000000e+00> : vector<64x384xf32>
    %46 = tpu.matmul %45, %43, %cst_29 {dimension_numbers = #tpu.dot_dimension_numbers<[1], [0], [0], [1], [0, 0, 1, 1], [], []>} : vector<64x4xbf16>, vector<4x384xbf16>, vector<64x384xf32> -> vector<64x384xf32>
    %47 = arith.addf %42, %46 : vector<64x384xf32>
    %c0_30 = arith.constant 0 : index
    %c0_31 = arith.constant 0 : index
    %48 = vector.load %arg3[%c0_30, %c0_31] : memref<64x1xf32, #tpu.memory_space<vmem>>, vector<64x1xf32>
    %49 = vector.broadcast %48 : vector<64x1xf32> to vector<64x384xf32>
    %50 = arith.addf %47, %49 : vector<64x384xf32>
    %cst_32 = arith.constant 0.000000e+00 : f32
    %51 = vector.broadcast %cst_32 : f32 to vector<64x384xf32>
    %52 = arith.maximumf %50, %51 : vector<64x384xf32>
    %53 = arith.truncf %52 : vector<64x384xf32> to vector<64x384xbf16>
    %c0_33 = arith.constant 0 : index
    %c0_34 = arith.constant 0 : index
    %54 = vector.load %arg4[%c0_33, %c0_34] : memref<16x64xbf16, #tpu.memory_space<vmem>>, vector<16x64xbf16>
    %cst_35 = arith.constant dense<0.000000e+00> : vector<16x384xf32>
    %55 = tpu.matmul %54, %53, %cst_35 {dimension_numbers = #tpu.dot_dimension_numbers<[1], [0], [0], [1], [0, 0, 1, 1], [], []>} : vector<16x64xbf16>, vector<64x384xbf16>, vector<16x384xf32> -> vector<16x384xf32>
    %c0_36 = arith.constant 0 : index
    %c0_37 = arith.constant 0 : index
    %56 = vector.load %arg5[%c0_36, %c0_37] : memref<16x1xf32, #tpu.memory_space<vmem>>, vector<16x1xf32>
    %57 = vector.broadcast %56 : vector<16x1xf32> to vector<16x384xf32>
    %58 = arith.addf %55, %57 : vector<16x384xf32>
    %59 = vector.extract_strided_slice %58 {offsets = [0, 0], sizes = [8, 384], strides = [1, 1]} : vector<16x384xf32> to vector<8x384xf32>
    %c0_38 = arith.constant 0 : index
    %c0_39 = arith.constant 0 : index
    %c0_40 = arith.constant 0 : index
    %60 = vector.load %arg6[%c0_38, %c0_39, %c0_40] : memref<1x8x384xf32, #tpu.memory_space<vmem>>, vector<1x8x384xf32>
    %61 = vector.shape_cast %60 : vector<1x8x384xf32> to vector<8x384xf32>
    %62 = vector.shape_cast %59 : vector<8x384xf32> to vector<1x8x384xf32>
    tpu.vector_store %arg6[%c0_38, %c0_39, %c0_40], %62 {strides = array<i32>} : memref<1x8x384xf32, #tpu.memory_space<vmem>>, vector<1x8x384xf32>,
    %63 = vector.extract_strided_slice %58 {offsets = [8, 0], sizes = [8, 384], strides = [1, 1]} : vector<16x384xf32> to vector<8x384xf32>
    %c0_41 = arith.constant 0 : index
    %c0_42 = arith.constant 0 : index
    %c0_43 = arith.constant 0 : index
    %64 = vector.load %arg7[%c0_41, %c0_42, %c0_43] : memref<1x8x384xf32, #tpu.memory_space<vmem>>, vector<1x8x384xf32>
    %65 = vector.shape_cast %64 : vector<1x8x384xf32> to vector<8x384xf32>
    %66 = vector.shape_cast %63 : vector<8x384xf32> to vector<1x8x384xf32>
    tpu.vector_store %arg7[%c0_41, %c0_42, %c0_43], %66 {strides = array<i32>} : memref<1x8x384xf32, #tpu.memory_space<vmem>>, vector<1x8x384xf32>,
    return
  }
  func.func @transform_0(%arg0: i32) -> (i32, i32, i32) {
    %c0_i32 = arith.constant 0 : i32
    %c0_i32_0 = arith.constant 0 : i32
    %c0_i32_1 = arith.constant 0 : i32
    return %arg0, %c0_i32, %c0_i32_0 : i32, i32, i32
  }
  func.func @transform_1(%arg0: i32) -> (i32, i32, i32) {
    %c0_i32 = arith.constant 0 : i32
    %c0_i32_0 = arith.constant 0 : i32
    %c0_i32_1 = arith.constant 0 : i32
    %c0_i32_2 = arith.constant 0 : i32
    return %c0_i32, %c0_i32_0, %c0_i32_1 : i32, i32, i32
  }
  func.func @transform_2(%arg0: i32) -> (i32, i32) {
    %c0_i32 = arith.constant 0 : i32
    %c0_i32_0 = arith.constant 0 : i32
    %c0_i32_1 = arith.constant 0 : i32
    return %c0_i32, %c0_i32_0 : i32, i32
  }
  func.func @transform_3(%arg0: i32) -> (i32, i32) {
    %c0_i32 = arith.constant 0 : i32
    %c0_i32_0 = arith.constant 0 : i32
    %c0_i32_1 = arith.constant 0 : i32
    return %c0_i32, %c0_i32_0 : i32, i32
  }
  func.func @transform_4(%arg0: i32) -> (i32, i32) {
    %c0_i32 = arith.constant 0 : i32
    %c0_i32_0 = arith.constant 0 : i32
    %c0_i32_1 = arith.constant 0 : i32
    return %c0_i32, %c0_i32_0 : i32, i32
  }
  func.func @transform_5(%arg0: i32) -> (i32, i32, i32) {
    %c0_i32 = arith.constant 0 : i32
    %c0_i32_0 = arith.constant 0 : i32
    %c0_i32_1 = arith.constant 0 : i32
    return %arg0, %c0_i32, %c0_i32_0 : i32, i32, i32
  }
  func.func @transform_6(%arg0: i32) -> (i32, i32, i32) {
    %c0_i32 = arith.constant 0 : i32
    %c0_i32_0 = arith.constant 0 : i32
    %c0_i32_1 = arith.constant 0 : i32
    return %arg0, %c0_i32, %c0_i32_0 : i32, i32, i32
  }
}

</mosaic_0001>

<llo_original>
// kernel: mean_teacher_forward.1
$region0: #{mean_teacher_forward.1}
  #allocation0 [shape = 'u32[]', space=smem, size = 0x4, offset = 0x4, fixed_abs, tag = 'smem constant byte address 0x4 - core index']
  #allocation1 [shape = 'u32[144,128]{1,0:T(1,128)}', space=vmem, size = 0x12000, scoped, tag = 'internal scratch']
  %s0 = inlined_call_operand.vmem [shape: bf16[2,4,456], index: 0, kind: input, shape index: {}]
  %s1 = inlined_call_operand.vmem [shape: bf16[9,64,4], index: 1, kind: input, shape index: {}]
  %s2 = inlined_call_operand.vmem [shape: f32[64,1], index: 2, kind: input, shape index: {}]
  %s3 = inlined_call_operand.vmem [shape: bf16[16,64], index: 3, kind: input, shape index: {}]
  %s4 = inlined_call_operand.vmem [shape: f32[16,1], index: 4, kind: input, shape index: {}]
  %s5 = inlined_call_operand.vmem [shape: f32[2,8,384], index: 5, kind: output, shape index: {0}]
  %s6 = inlined_call_operand.vmem [shape: f32[2,8,384], index: 6, kind: output, shape index: {1}]
  %7 = xla_tuple %s5, %s6
  %s8 = sld [smem:[#allocation0]]
  $region61: #{mean_teacher_forward.1} parent=0
    _
  %s10 = ssub.s32 1, %s8
  %s11 = scalar_select 0, %s10, %s8
  loop: start=0, step=1, limit=4
  $region2: #{mean_teacher_forward.1} parent=0 // loop_pre_header
    _
  $region3: #{mean_teacher_forward.1} parent=0 // loop_header
    %s13 = sphi 0, %s17
    %p14 = scmp.ge.s32.totalorder %s13, 4
    %s23 = sphi 0, %s25
    %s26 = sphi 0, %s23
    %s27 = sphi 0, %s26
    %s43 = sphi 0, %s27
    %s47 = sphi 0, %s47
    %s49 = sphi 0, %s47
    %s50 = sphi 0, %s49
    %s64 = sphi 0, %s50
    %s68 = sphi 0, %s68
    %s70 = sphi 0, %s68
    %s71 = sphi 0, %s70
    %s85 = sphi 0, %s71
    %s89 = sphi 0, %s89
    %s91 = sphi 0, %s89
    %s92 = sphi 0, %s91
    %s106 = sphi 0, %s92
    %s110 = sphi 0, %s110
    %s112 = sphi 0, %s110
    %s113 = sphi 0, %s112
    %s127 = sphi 0, %s113
    %s133 = sphi 0, %s135
    %s136 = sphi 0, %s133
    %s137 = sphi 0, %s136
    %s153 = sphi 0, %s137
    %s159 = sphi 0, %s161
    %s162 = sphi 0, %s159
    %s163 = sphi 0, %s162
    %s179 = sphi 0, %s163
  $region4: #{mean_teacher_forward.1} parent=0 // loop_header_branch
    %16 = sbr.rel (%p14) target = $region8
  $region5: #{mean_teacher_forward.1} parent=0 // loop_body
    %s18 = ssub.s32 %s13, 1
    %s19 = ssub.s32 %s13, 2
    %s20 = sadd.s32 %s13, 1
    %s21 = ssub.s32 %s13, %s20
    %p22 = scmp.eq.s32.totalorder %s21, 0
    %s24 = sadd.s32 %s23, 1
    %s25 = scalar_select %p22, %s23, %s24
    %p28 = pneg %p22
    %p29 = scmp.eq.s32.totalorder %s13, 1
    %p30 = por %p28, %p29
    %p31 = scmp.ne.s32.totalorder %s23, %s26
    %p32 = scmp.eq.s32.totalorder %s13, 0
    %p33 = por %p31, %p32
    %p34 = scmp.ne.s32.totalorder %s23, %s26
    %p35 = scmp.eq.s32.totalorder %s18, 1
    %p36 = por %p34, %p35
    %p37 = scmp.ne.s32.totalorder %s26, %s27
    %p38 = scmp.eq.s32.totalorder %s18, 0
    %p39 = por %p37, %p38
    %p40 = scmp.ne.s32.totalorder %s26, %s27
    %p41 = scmp.eq.s32.totalorder %s19, 1
    %p42 = por %p40, %p41
    %p44 = scmp.ne.s32.totalorder %s27, %s43
    %p45 = scmp.eq.s32.totalorder %s19, 0
    %p46 = por %p44, %p45
    %s48 = sadd.s32 %s47, 1
    %p51 = scmp.eq.s32.totalorder %s13, 1
    %p52 = scmp.ne.s32.totalorder %s47, %s49
    %p53 = scmp.eq.s32.totalorder %s13, 0
    %p54 = por %p52, %p53
    %p55 = scmp.ne.s32.totalorder %s47, %s49
    %p56 = scmp.eq.s32.totalorder %s18, 1
    %p57 = por %p55, %p56
    %p58 = scmp.ne.s32.totalorder %s49, %s50
    %p59 = scmp.eq.s32.totalorder %s18, 0
    %p60 = por %p58, %p59
    %p61 = scmp.ne.s32.totalorder %s49, %s50
    %p62 = scmp.eq.s32.totalorder %s19, 1
    %p63 = por %p61, %p62
    %p65 = scmp.ne.s32.totalorder %s50, %s64
    %p66 = scmp.eq.s32.totalorder %s19, 0
    %p67 = por %p65, %p66
    %s69 = sadd.s32 %s68, 1
    %p72 = scmp.eq.s32.totalorder %s13, 1
    %p73 = scmp.ne.s32.totalorder %s68, %s70
    %p74 = scmp.eq.s32.totalorder %s13, 0
    %p75 = por %p73, %p74
    %p76 = scmp.ne.s32.totalorder %s68, %s70
    %p77 = scmp.eq.s32.totalorder %s18, 1
    %p78 = por %p76, %p77
    %p79 = scmp.ne.s32.totalorder %s70, %s71
    %p80 = scmp.eq.s32.totalorder %s18, 0
    %p81 = por %p79, %p80
    %p82 = scmp.ne.s32.totalorder %s70, %s71
    %p83 = scmp.eq.s32.totalorder %s19, 1
    %p84 = por %p82, %p83
    %p86 = scmp.ne.s32.totalorder %s71, %s85
    %p87 = scmp.eq.s32.totalorder %s19, 0
    %p88 = por %p86, %p87
    %s90 = sadd.s32 %s89, 1
    %p93 = scmp.eq.s32.totalorder %s13, 1
    %p94 = scmp.ne.s32.totalorder %s89, %s91
    %p95 = scmp.eq.s32.totalorder %s13, 0
    %p96 = por %p94, %p95
    %p97 = scmp.ne.s32.totalorder %s89, %s91
    %p98 = scmp.eq.s32.totalorder %s18, 1
    %p99 = por %p97, %p98
    %p100 = scmp.ne.s32.totalorder %s91, %s92
    %p101 = scmp.eq.s32.totalorder %s18, 0
    %p102 = por %p100, %p101
    %p103 = scmp.ne.s32.totalorder %s91, %s92
    %p104 = scmp.eq.s32.totalorder %s19, 1
    %p105 = por %p103, %p104
    %p107 = scmp.ne.s32.totalorder %s92, %s106
    %p108 = scmp.eq.s32.totalorder %s19, 0
    %p109 = por %p107, %p108
    %s111 = sadd.s32 %s110, 1
    %p114 = scmp.eq.s32.totalorder %s13, 1
    %p115 = scmp.ne.s32.totalorder %s110, %s112
    %p116 = scmp.eq.s32.totalorder %s13, 0
    %p117 = por %p115, %p116
    %p118 = scmp.ne.s32.totalorder %s110, %s112
    %p119 = scmp.eq.s32.totalorder %s18, 1
    %p120 = por %p118, %p119
    %p121 = scmp.ne.s32.totalorder %s112, %s113
    %p122 = scmp.eq.s32.totalorder %s18, 0
    %p123 = por %p121, %p122
    %p124 = scmp.ne.s32.totalorder %s112, %s113
    %p125 = scmp.eq.s32.totalorder %s19, 1
    %p126 = por %p124, %p125
    %p128 = scmp.ne.s32.totalorder %s113, %s127
    %p129 = scmp.eq.s32.totalorder %s19, 0
    %p130 = por %p128, %p129
    %s131 = ssub.s32 %s13, %s20
    %p132 = scmp.eq.s32.totalorder %s131, 0
    %s134 = sadd.s32 %s133, 1
    %s135 = scalar_select %p132, %s133, %s134
    %p138 = pneg %p132
    %p139 = scmp.eq.s32.totalorder %s13, 1
    %p140 = por %p138, %p139
    %p141 = scmp.ne.s32.totalorder %s133, %s136
    %p142 = scmp.eq.s32.totalorder %s13, 0
    %p143 = por %p141, %p142
    %p144 = scmp.ne.s32.totalorder %s133, %s136
    %p145 = scmp.eq.s32.totalorder %s18, 1
    %p146 = por %p144, %p145
    %p147 = scmp.ne.s32.totalorder %s136, %s137
    %p148 = scmp.eq.s32.totalorder %s18, 0
    %p149 = por %p147, %p148
    %p150 = scmp.ne.s32.totalorder %s136, %s137
    %p151 = scmp.eq.s32.totalorder %s19, 1
    %p152 = por %p150, %p151
    %p154 = scmp.ne.s32.totalorder %s137, %s153
    %p155 = scmp.eq.s32.totalorder %s19, 0
    %p156 = por %p154, %p155
    %s157 = ssub.s32 %s13, %s20
    %p158 = scmp.eq.s32.totalorder %s157, 0
    %s160 = sadd.s32 %s159, 1
    %s161 = scalar_select %p158, %s159, %s160
    %p164 = pneg %p158
    %p165 = scmp.eq.s32.totalorder %s13, 1
    %p166 = por %p164, %p165
    %p167 = scmp.ne.s32.totalorder %s159, %s162
    %p168 = scmp.eq.s32.totalorder %s13, 0
    %p169 = por %p167, %p168
    %p170 = scmp.ne.s32.totalorder %s159, %s162
    %p171 = scmp.eq.s32.totalorder %s18, 1
    %p172 = por %p170, %p171
    %p173 = scmp.ne.s32.totalorder %s162, %s163
    %p174 = scmp.eq.s32.totalorder %s18, 0
    %p175 = por %p173, %p174
    %p176 = scmp.ne.s32.totalorder %s162, %s163
    %p177 = scmp.eq.s32.totalorder %s19, 1
    %p178 = por %p176, %p177
    %p180 = scmp.ne.s32.totalorder %s163, %s179
    %p181 = scmp.eq.s32.totalorder %s19, 0
    %p182 = por %p180, %p181
    %p183 = scmp.le.s32.totalorder 1, %s13
    %p184 = scmp.lt.s32.totalorder %s13, 3
    %p185 = pnand %p183, %p184
    %p186 = pneg %p185
    // Predicated region
    $region9: #{mean_teacher_forward.1} parent=5 // pred_check
      _
    $region10: #{mean_teacher_forward.1} parent=5 // pred_check_branch
      %188 = sbr.rel (%p185) target = $region12
    $region11: #{mean_teacher_forward.1} parent=5 // pred_region
      %s189 = ssub.s32 %s13, 1
      // Predicated region
      $region13: #{mean_teacher_forward.1} parent=11 // pred_check
        %p190 = pneg %p60
      $region14: #{mean_teacher_forward.1} parent=11 // pred_check_branch
        %192 = sbr.rel (%p190) target = $region16
      $region15: #{mean_teacher_forward.1} parent=11 // pred_region
        _
      $region16: #{mean_teacher_forward.1} parent=11 // pred_fallthru
        _
      // Predicated region
      $region17: #{mean_teacher_forward.1} parent=11 // pred_check
        %p193 = pneg %p81
      $region18: #{mean_teacher_forward.1} parent=11 // pred_check_branch
        %195 = sbr.rel (%p193) target = $region20
      $region19: #{mean_teacher_forward.1} parent=11 // pred_region
        _
      $region20: #{mean_teacher_forward.1} parent=11 // pred_fallthru
        _
      // Predicated region
      $region21: #{mean_teacher_forward.1} parent=11 // pred_check
        %p196 = pneg %p102
      $region22: #{mean_teacher_forward.1} parent=11 // pred_check_branch
        %198 = sbr.rel (%p196) target = $region24
      $region23: #{mean_teacher_forward.1} parent=11 // pred_region
        _
      $region24: #{mean_teacher_forward.1} parent=11 // pred_fallthru
        _
      // Predicated region
      $region25: #{mean_teacher_forward.1} parent=11 // pred_check
        %p199 = pneg %p123
      $region26: #{mean_teacher_forward.1} parent=11 // pred_check_branch
        %201 = sbr.rel (%p199) target = $region28
      $region27: #{mean_teacher_forward.1} parent=11 // pred_region
        _
      $region28: #{mean_teacher_forward.1} parent=11 // pred_fallthru
        _
    $region12: #{mean_teacher_forward.1} parent=5 // pred_fallthru
      _
    %p202 = scmp.lt.s32.totalorder %s13, 2
    // Predicated region
    $region29: #{mean_teacher_forward.1} parent=5 // pred_check
      %p203 = pneg %p202
    $region30: #{mean_teacher_forward.1} parent=5 // pred_check_branch
      %205 = sbr.rel (%p203) target = $region32
    $region31: #{mean_teacher_forward.1} parent=5 // pred_region
      // Predicated region
      $region33: #{mean_teacher_forward.1} parent=31 // pred_check
        %p206 = pneg %p33
      $region34: #{mean_teacher_forward.1} parent=31 // pred_check_branch
        %208 = sbr.rel (%p206) target = $region36
      $region35: #{mean_teacher_forward.1} parent=31 // pred_region
        %p209 = scmp.lt.s32.totalorder %s13, 1
        %s210 = scalar_select %p209, %s13, 1
        %s211 = smul.addr %s210, 4
        %s212 = smul.addr %s211, 2
        %s213 = scalar_lea.vmem %s0, %s212
      $region36: #{mean_teacher_forward.1} parent=31 // pred_fallthru
        _
    $region32: #{mean_teacher_forward.1} parent=5 // pred_fallthru
      _
    %p214 = scmp.le.s32.totalorder 1, %s13
    %p215 = scmp.lt.s32.totalorder %s13, 3
    %p216 = pnand %p214, %p215
    %p217 = pneg %p216
    // Predicated region
    $region37: #{mean_teacher_forward.1} parent=5 // pred_check
      _
    $region38: #{mean_teacher_forward.1} parent=5 // pred_check_branch
      %219 = sbr.rel (%p216) target = $region40
    $region39: #{mean_teacher_forward.1} parent=5 // pred_region
      %s220 = ssub.s32 %s13, 1
      %p221 = scmp.lt.s32.totalorder %s18, 1
      %s222 = scalar_select %p221, %s18, 1
      %s223 = smul.addr %s222, 4
      %s224 = smul.addr %s223, 2
      %s225 = scalar_lea.vmem %s0, %s224
      %p226 = pneg %p39
      %p227 = pneg %p36
      %p228 = pneg %p60
      %p229 = pneg %p57
      %p230 = pneg %p81
      %p231 = pneg %p78
      %p232 = pneg %p102
      %p233 = pneg %p99
      %p234 = pneg %p123
      %p235 = pneg %p120
      %p236 = pneg %p149
      %p237 = pneg %p146
      %p238 = scmp.lt.s32.totalorder %s18, 1
      %s239 = scalar_select %p238, %s18, 1
      %s240 = smul.addr %s239, 3
      %s241 = smul.addr %s240, 8
      %s242 = scalar_lea.vmem %s5, %s241
      %p243 = pneg %p175
      %p244 = pneg %p172
      %p245 = scmp.lt.s32.totalorder %s18, 1
      %s246 = scalar_select %p245, %s18, 1
      %s247 = smul.addr %s246, 3
      %s248 = smul.addr %s247, 8
      %s249 = scalar_lea.vmem %s6, %s248
      %p250 = scmp.lt.s32.totalorder %s18, 1
      %s251 = scalar_select %p250, %s18, 1
      %s252 = smul.addr %s251, 4
      %s253 = smul.addr %s252, 2
      %s254 = scalar_lea.vmem %s0, %s253
      %p255 = scmp.lt.s32.totalorder %s18, 1
      %s256 = scalar_select %p255, %s18, 1
      %s257 = smul.addr %s256, 3
      %s258 = smul.addr %s257, 8
      %s259 = scalar_lea.vmem %s5, %s258
      %p260 = scmp.lt.s32.totalorder %s18, 1
      %s261 = scalar_select %p260, %s18, 1
      %s262 = smul.addr %s261, 3
      %s263 = smul.addr %s262, 8
      %s264 = scalar_lea.vmem %s6, %s263
      %v266 = vld [vmem:[%s254] sm:$0xff]
      %v267 = vld [vmem:[%s1] sm:$0xf]
      %v268 = vld [vmem:[%s1 + $0x4] sm:$0xf]
      %v269 = vld [vmem:[%s1 + $0x8] sm:$0xf]
      %v270 = vld [vmem:[%s1 + $0xc] sm:$0xf]
      %v271 = vld [vmem:[%s1 + $0x10] sm:$0xf]
      %v272 = vld [vmem:[%s1 + $0x14] sm:$0xf]
      %v273 = vld [vmem:[%s1 + $0x18] sm:$0xf]
      %v274 = vld [vmem:[%s1 + $0x1c] sm:$0xf]
      %s275 = scalar_lea.vmem %s1, 32
      %v276 = vld [vmem:[%s275] sm:$0xf]
      %v277 = vld [vmem:[%s275 + $0x4] sm:$0xf]
      %v278 = vld [vmem:[%s275 + $0x8] sm:$0xf]
      %v279 = vld [vmem:[%s275 + $0xc] sm:$0xf]
      %v280 = vld [vmem:[%s275 + $0x10] sm:$0xf]
      %v281 = vld [vmem:[%s275 + $0x14] sm:$0xf]
      %v282 = vld [vmem:[%s275 + $0x18] sm:$0xf]
      %v283 = vld [vmem:[%s275 + $0x1c] sm:$0xf]
      %v292 = vunpack.c.l.b16 %v276
      %v293 = vunpack.c.l.b16 %v277
      %v294 = vunpack.c.l.b16 %v278
      %v295 = vunpack.c.l.b16 %v279
      %v296 = vunpack.c.l.b16 %v280
      %v297 = vunpack.c.l.b16 %v281
      %v298 = vunpack.c.l.b16 %v282
      %v299 = vunpack.c.l.b16 %v283
      %v300 = vpack.c.b16 %v293, %v292
      %v301 = vpack.c.b16 %v295, %v294
      %v302 = vpack.c.b16 %v297, %v296
      %v303 = vpack.c.b16 %v299, %v298
      %v305 = vcombine.high %v266, %v266
      %v307 = vunpack.c.l.s4 1983009808
      %v308 = vunpack.c.0.s8 %v307
      %v309 = vlaneseq
      %v310 = vshrl.u32 %v309, 7
      %v311 = vsub.s32 %v308, %v310
      %v312 = vrot.slane %v266, %v311
      %v314 = vunpack.c.l.s4 1983009808
      %v315 = vunpack.c.0.s8 %v314
      %v316 = vlaneseq
      %v317 = vshrl.u32 %v316, 7
      %v318 = vsub.s32 %v315, %v317
      %v319 = vrot.slane %v305, %v318
      %v320 = vcombine.high %v312, %v312
      %v321 = vcombine.high %v319, %v319
      %322 = vrot.lane.b32.xlu0 %v312, 127
      %v323 = vpop.permute.xlu0 %322
      %324 = vrot.lane.b32.xlu0 %v320, 127
      %v325 = vpop.permute.xlu0 %324
      %326 = vrot.lane.b32.xlu0 %v319, 127
      %v327 = vpop.permute.xlu0 %326
      %328 = vrot.lane.b32.xlu0 %v321, 127
      %v329 = vpop.permute.xlu0 %328
      %vm330 = vcmask 1039360
      %v331 = vsel %vm330, %v323, %v325
      %v332 = vsel %vm330, %v325, %v327
      %v333 = vsel %vm330, %v327, %v329
      %vm334 = vcmask 31744
      %v336 = vsel %vm334, %v300, 0
      %v339 = vsel %vm334, %v301, 0
      %v342 = vsel %vm334, %v302, 0
      %v345 = vsel %vm334, %v303, 0
      %vm347 = vcmask 1041408
      %v349 = vsel %vm347, %v331, 0
      %v352 = vsel %vm347, %v332, 0
      %v355 = vsel %vm347, %v333, 0
      %357 = vmatprep.subr.bf16.mxu0 0
      %358 = vmatpush1.bf16.msra.mxu0 0
      %359 = vmatprep.subr.bf16.mxu0 0
      %360 = vmatpush1.bf16.msra.mxu0 0
      %361 = vmatprep.subr.bf16.mxu0 0
      %362 = vmatpush1.bf16.msra.mxu0 0
      %363 = vmatprep.subr.bf16.mxu0 0
      %364 = vmatpush1.bf16.msra.mxu0 0
      %365 = vmatprep.subr.bf16.mxu0 0
      %366 = vmatpush1.bf16.msra.mxu0 0
      %367 = vmatprep.subr.bf16.mxu0 0
      %368 = vmatpush1.bf16.msra.mxu0 0
      %369 = vmatprep.subr.bf16.mxu0 0
      %370 = vmatpush1.bf16.msra.mxu0 0
      %371 = vmatprep.subr.bf16.mxu0 %v352
      %372 = vmatpush1.bf16.msra.mxu0 %v349
      %373 = vmatprep.subr.bf16.mxu0 0
      %374 = vmatpush2.bf16.msra.mxu0 0
      %375 = vmatprep.subr.bf16.mxu0 0
      %376 = vmatpush2.bf16.msra.mxu0 0
      %377 = vmatprep.subr.bf16.mxu0 0
      %378 = vmatpush2.bf16.msra.mxu0 0
      %379 = vmatprep.subr.bf16.mxu0 0
      %380 = vmatpush2.bf16.msra.mxu0 0
      %381 = vmatprep.subr.bf16.mxu0 0
      %382 = vmatpush2.bf16.msra.mxu0 0
      %383 = vmatprep.subr.bf16.mxu0 0
      %384 = vmatpush2.bf16.msra.mxu0 0
      %385 = vmatprep.subr.bf16.mxu0 0
      %386 = vmatpush2.bf16.msra.mxu0 0
      %387 = vmatprep.subr.bf16.mxu0 0
      %388 = vmatpush2.bf16.msra.mxu0 0
      %389 = vmatprep.mubr.bf16.mxu0 0
      %390 = vmatmul.mubr.bf16.gmra.mxu0 %v336
      %v391 = vpop.f32.mrf.mxu0
      %v392 = vadd.f32 0.0, %v391
      %v393 = vpop.f32.mrf.mxu0
      %v394 = vadd.f32 0.0, %v393
      %v395 = vpop.f32.mrf.mxu0
      %v396 = vadd.f32 0.0, %v395
      %v397 = vpop.f32.mrf.mxu0
      %v398 = vadd.f32 0.0, %v397
      %399 = vmatprep.mubr.bf16.mxu0 0
      %400 = vmatmul.mubr.bf16.gmra.mxu0 %v339
      %v401 = vpop.f32.mrf.mxu0
      %v402 = vadd.f32 0.0, %v401
      %v403 = vpop.f32.mrf.mxu0
      %v404 = vadd.f32 0.0, %v403
      %v405 = vpop.f32.mrf.mxu0
      %v406 = vadd.f32 0.0, %v405
      %v407 = vpop.f32.mrf.mxu0
      %v408 = vadd.f32 0.0, %v407
      %409 = vmatprep.mubr.bf16.mxu0 0
      %410 = vmatmul.mubr.bf16.gmra.mxu0 %v342
      %v411 = vpop.f32.mrf.mxu0
      %v412 = vadd.f32 0.0, %v411
      %v413 = vpop.f32.mrf.mxu0
      %v414 = vadd.f32 0.0, %v413
      %v415 = vpop.f32.mrf.mxu0
      %v416 = vadd.f32 0.0, %v415
      %v417 = vpop.f32.mrf.mxu0
      %v418 = vadd.f32 0.0, %v417
      %419 = vmatprep.mubr.bf16.mxu0 0
      %420 = vmatmul.mubr.bf16.gmra.mxu0 %v345
      %v421 = vpop.f32.mrf.mxu0
      %v422 = vadd.f32 0.0, %v421
      %v423 = vpop.f32.mrf.mxu0
      %v424 = vadd.f32 0.0, %v423
      %v425 = vpop.f32.mrf.mxu0
      %v426 = vadd.f32 0.0, %v425
      %v427 = vpop.f32.mrf.mxu0
      %v428 = vadd.f32 0.0, %v427
      %429 = vdwg.mxu0
      %430 = vmatprep.subr.bf16.mxu0 0
      %431 = vmatpush1.bf16.msra.mxu0 0
      %432 = vmatprep.subr.bf16.mxu0 0
      %433 = vmatpush1.bf16.msra.mxu0 0
      %434 = vmatprep.subr.bf16.mxu0 0
      %435 = vmatpush1.bf16.msra.mxu0 0
      %436 = vmatprep.subr.bf16.mxu0 0
      %437 = vmatpush1.bf16.msra.mxu0 0
      %438 = vmatprep.subr.bf16.mxu0 0
      %439 = vmatpush1.bf16.msra.mxu0 0
      %440 = vmatprep.subr.bf16.mxu0 0
      %441 = vmatpush1.bf16.msra.mxu0 0
      %442 = vmatprep.subr.bf16.mxu0 0
      %443 = vmatpush1.bf16.msra.mxu0 0
      %444 = vmatprep.subr.bf16.mxu0 0
      %445 = vmatpush1.bf16.msra.mxu0 %v355
      %446 = vmatprep.subr.bf16.mxu0 0
      %447 = vmatpush2.bf16.msra.mxu0 0
      %448 = vmatprep.subr.bf16.mxu0 0
      %449 = vmatpush2.bf16.msra.mxu0 0
      %450 = vmatprep.subr.bf16.mxu0 0
      %451 = vmatpush2.bf16.msra.mxu0 0
      %452 = vmatprep.subr.bf16.mxu0 0
      %453 = vmatpush2.bf16.msra.mxu0 0
      %454 = vmatprep.subr.bf16.mxu0 0
      %455 = vmatpush2.bf16.msra.mxu0 0
      %456 = vmatprep.subr.bf16.mxu0 0
      %457 = vmatpush2.bf16.msra.mxu0 0
      %458 = vmatprep.subr.bf16.mxu0 0
      %459 = vmatpush2.bf16.msra.mxu0 0
      %460 = vmatprep.subr.bf16.mxu0 0
      %461 = vmatpush2.bf16.msra.mxu0 0
      %462 = vmatprep.mubr.bf16.mxu0 0
      %463 = vmatmul.mubr.bf16.gmra.mxu0 %v336
      %v464 = vpop.f32.mrf.mxu0
      %v465 = vadd.f32 0.0, %v464
      %v466 = vpop.f32.mrf.mxu0
      %v467 = vpop.f32.mrf.mxu0
      %v468 = vadd.f32 0.0, %v467
      %v469 = vpop.f32.mrf.mxu0
      %470 = vmatprep.mubr.bf16.mxu0 0
      %471 = vmatmul.mubr.bf16.gmra.mxu0 %v339
      %v472 = vpop.f32.mrf.mxu0
      %v473 = vadd.f32 0.0, %v472
      %v474 = vpop.f32.mrf.mxu0
      %v475 = vpop.f32.mrf.mxu0
      %v476 = vadd.f32 0.0, %v475
      %v477 = vpop.f32.mrf.mxu0
      %478 = vmatprep.mubr.bf16.mxu0 0
      %479 = vmatmul.mubr.bf16.gmra.mxu0 %v342
      %v480 = vpop.f32.mrf.mxu0
      %v481 = vadd.f32 0.0, %v480
      %v482 = vpop.f32.mrf.mxu0
      %v483 = vpop.f32.mrf.mxu0
      %v484 = vadd.f32 0.0, %v483
      %v485 = vpop.f32.mrf.mxu0
      %486 = vmatprep.mubr.bf16.mxu0 0
      %487 = vmatmul.mubr.bf16.gmra.mxu0 %v345
      %v488 = vpop.f32.mrf.mxu0
      %v489 = vadd.f32 0.0, %v488
      %v490 = vpop.f32.mrf.mxu0
      %v491 = vpop.f32.mrf.mxu0
      %v492 = vadd.f32 0.0, %v491
      %v493 = vpop.f32.mrf.mxu0
      %494 = vdwg.mxu0
      %v503 = vunpack.c.l.b16 %v267
      %v504 = vunpack.c.l.b16 %v268
      %v505 = vunpack.c.l.b16 %v269
      %v506 = vunpack.c.l.b16 %v270
      %v507 = vunpack.c.l.b16 %v271
      %v508 = vunpack.c.l.b16 %v272
      %v509 = vunpack.c.l.b16 %v273
      %v510 = vunpack.c.l.b16 %v274
      %v511 = vpack.c.b16 %v504, %v503
      %v512 = vpack.c.b16 %v506, %v505
      %v513 = vpack.c.b16 %v508, %v507
      %v514 = vpack.c.b16 %v510, %v509
      %v516 = vsel %vm334, %v511, 0
      %v519 = vsel %vm334, %v512, 0
      %v522 = vsel %vm334, %v513, 0
      %v525 = vsel %vm334, %v514, 0
      %v528 = vsel %vm347, %v312, 0
      %v531 = vsel %vm347, %v320, 0
      %v534 = vsel %vm347, %v319, 0
      %536 = vmatprep.subr.bf16.mxu0 0
      %537 = vmatpush1.bf16.msra.mxu0 0
      %538 = vmatprep.subr.bf16.mxu0 0
      %539 = vmatpush1.bf16.msra.mxu0 0
      %540 = vmatprep.subr.bf16.mxu0 0
      %541 = vmatpush1.bf16.msra.mxu0 0
      %542 = vmatprep.subr.bf16.mxu0 0
      %543 = vmatpush1.bf16.msra.mxu0 0
      %544 = vmatprep.subr.bf16.mxu0 0
      %545 = vmatpush1.bf16.msra.mxu0 0
      %546 = vmatprep.subr.bf16.mxu0 0
      %547 = vmatpush1.bf16.msra.mxu0 0
      %548 = vmatprep.subr.bf16.mxu0 0
      %549 = vmatpush1.bf16.msra.mxu0 0
      %550 = vmatprep.subr.bf16.mxu0 %v531
      %551 = vmatpush1.bf16.msra.mxu0 %v528
      %552 = vmatprep.subr.bf16.mxu0 0
      %553 = vmatpush2.bf16.msra.mxu0 0
      %554 = vmatprep.subr.bf16.mxu0 0
      %555 = vmatpush2.bf16.msra.mxu0 0
      %556 = vmatprep.subr.bf16.mxu0 0
      %557 = vmatpush2.bf16.msra.mxu0 0
      %558 = vmatprep.subr.bf16.mxu0 0
      %559 = vmatpush2.bf16.msra.mxu0 0
      %560 = vmatprep.subr.bf16.mxu0 0
      %561 = vmatpush2.bf16.msra.mxu0 0
      %562 = vmatprep.subr.bf16.mxu0 0
      %563 = vmatpush2.bf16.msra.mxu0 0
      %564 = vmatprep.subr.bf16.mxu0 0
      %565 = vmatpush2.bf16.msra.mxu0 0
      %566 = vmatprep.subr.bf16.mxu0 0
      %567 = vmatpush2.bf16.msra.mxu0 0
      %568 = vmatprep.mubr.bf16.mxu0 0
      %569 = vmatmul.mubr.bf16.gmra.mxu0 %v516
      %v570 = vpop.f32.mrf.mxu0
      %v571 = vadd.f32 %v392, %v570
      %v572 = vpop.f32.mrf.mxu0
      %v573 = vadd.f32 %v394, %v572
      %v574 = vpop.f32.mrf.mxu0
      %v575 = vadd.f32 %v396, %v574
      %v576 = vpop.f32.mrf.mxu0
      %v577 = vadd.f32 %v398, %v576
      %578 = vmatprep.mubr.bf16.mxu0 0
      %579 = vmatmul.mubr.bf16.gmra.mxu0 %v519
      %v580 = vpop.f32.mrf.mxu0
      %v581 = vadd.f32 %v402, %v580
      %v582 = vpop.f32.mrf.mxu0
      %v583 = vadd.f32 %v404, %v582
      %v584 = vpop.f32.mrf.mxu0
      %v585 = vadd.f32 %v406, %v584
      %v586 = vpop.f32.mrf.mxu0
      %v587 = vadd.f32 %v408, %v586
      %588 = vmatprep.mubr.bf16.mxu0 0
      %589 = vmatmul.mubr.bf16.gmra.mxu0 %v522
      %v590 = vpop.f32.mrf.mxu0
      %v591 = vadd.f32 %v412, %v590
      %v592 = vpop.f32.mrf.mxu0
      %v593 = vadd.f32 %v414, %v592
      %v594 = vpop.f32.mrf.mxu0
      %v595 = vadd.f32 %v416, %v594
      %v596 = vpop.f32.mrf.mxu0
      %v597 = vadd.f32 %v418, %v596
      %598 = vmatprep.mubr.bf16.mxu0 0
      %599 = vmatmul.mubr.bf16.gmra.mxu0 %v525
      %v600 = vpop.f32.mrf.mxu0
      %v601 = vadd.f32 %v422, %v600
      %v602 = vpop.f32.mrf.mxu0
      %v603 = vadd.f32 %v424, %v602
      %v604 = vpop.f32.mrf.mxu0
      %v605 = vadd.f32 %v426, %v604
      %v606 = vpop.f32.mrf.mxu0
      %v607 = vadd.f32 %v428, %v606
      %608 = vdwg.mxu0
      %609 = vmatprep.subr.bf16.mxu0 0
      %610 = vmatpush1.bf16.msra.mxu0 0
      %611 = vmatprep.subr.bf16.mxu0 0
      %612 = vmatpush1.bf16.msra.mxu0 0
      %613 = vmatprep.subr.bf16.mxu0 0
      %614 = vmatpush1.bf16.msra.mxu0 0
      %615 = vmatprep.subr.bf16.mxu0 0
      %616 = vmatpush1.bf16.msra.mxu0 0
      %617 = vmatprep.subr.bf16.mxu0 0
      %618 = vmatpush1.bf16.msra.mxu0 0
      %619 = vmatprep.subr.bf16.mxu0 0
      %620 = vmatpush1.bf16.msra.mxu0 0
      %621 = vmatprep.subr.bf16.mxu0 0
      %622 = vmatpush1.bf16.msra.mxu0 0
      %623 = vmatprep.subr.bf16.mxu0 0
      %624 = vmatpush1.bf16.msra.mxu0 %v534
      %625 = vmatprep.subr.bf16.mxu0 0
      %626 = vmatpush2.bf16.msra.mxu0 0
      %627 = vmatprep.subr.bf16.mxu0 0
      %628 = vmatpush2.bf16.msra.mxu0 0
      %629 = vmatprep.subr.bf16.mxu0 0
      %630 = vmatpush2.bf16.msra.mxu0 0
      %631 = vmatprep.subr.bf16.mxu0 0
      %632 = vmatpush2.bf16.msra.mxu0 0
      %633 = vmatprep.subr.bf16.mxu0 0
      %634 = vmatpush2.bf16.msra.mxu0 0
      %635 = vmatprep.subr.bf16.mxu0 0
      %636 = vmatpush2.bf16.msra.mxu0 0
      %637 = vmatprep.subr.bf16.mxu0 0
      %638 = vmatpush2.bf16.msra.mxu0 0
      %639 = vmatprep.subr.bf16.mxu0 0
      %640 = vmatpush2.bf16.msra.mxu0 0
      %641 = vmatprep.mubr.bf16.mxu0 0
      %642 = vmatmul.mubr.bf16.gmra.mxu0 %v516
      %v643 = vpop.f32.mrf.mxu0
      %v644 = vadd.f32 %v465, %v643
      %v645 = vpop.f32.mrf.mxu0
      %v646 = vpop.f32.mrf.mxu0
      %v647 = vadd.f32 %v468, %v646
      %v648 = vpop.f32.mrf.mxu0
      %649 = vmatprep.mubr.bf16.mxu0 0
      %650 = vmatmul.mubr.bf16.gmra.mxu0 %v519
      %v651 = vpop.f32.mrf.mxu0
      %v652 = vadd.f32 %v473, %v651
      %v653 = vpop.f32.mrf.mxu0
      %v654 = vpop.f32.mrf.mxu0
      %v655 = vadd.f32 %v476, %v654
      %v656 = vpop.f32.mrf.mxu0
      %657 = vmatprep.mubr.bf16.mxu0 0
      %658 = vmatmul.mubr.bf16.gmra.mxu0 %v522
      %v659 = vpop.f32.mrf.mxu0
      %v660 = vadd.f32 %v481, %v659
      %v661 = vpop.f32.mrf.mxu0
      %v662 = vpop.f32.mrf.mxu0
      %v663 = vadd.f32 %v484, %v662
      %v664 = vpop.f32.mrf.mxu0
      %665 = vmatprep.mubr.bf16.mxu0 0
      %666 = vmatmul.mubr.bf16.gmra.mxu0 %v525
      %v667 = vpop.f32.mrf.mxu0
      %v668 = vadd.f32 %v489, %v667
      %v669 = vpop.f32.mrf.mxu0
      %v670 = vpop.f32.mrf.mxu0
      %v671 = vadd.f32 %v492, %v670
      %v672 = vpop.f32.mrf.mxu0
      %673 = vdwg.mxu0
      %s674 = scalar_lea.vmem %s1, 64
      %v675 = vld [vmem:[%s674] sm:$0xf]
      %v676 = vld [vmem:[%s674 + $0x4] sm:$0xf]
      %v677 = vld [vmem:[%s674 + $0x8] sm:$0xf]
      %v678 = vld [vmem:[%s674 + $0xc] sm:$0xf]
      %v679 = vld [vmem:[%s674 + $0x10] sm:$0xf]
      %v680 = vld [vmem:[%s674 + $0x14] sm:$0xf]
      %v681 = vld [vmem:[%s674 + $0x18] sm:$0xf]
      %v682 = vld [vmem:[%s674 + $0x1c] sm:$0xf]
      %v691 = vunpack.c.l.b16 %v675
      %v692 = vunpack.c.l.b16 %v676
      %v693 = vunpack.c.l.b16 %v677
      %v694 = vunpack.c.l.b16 %v678
      %v695 = vunpack.c.l.b16 %v679
      %v696 = vunpack.c.l.b16 %v680
      %v697 = vunpack.c.l.b16 %v681
      %v698 = vunpack.c.l.b16 %v682
      %v699 = vpack.c.b16 %v692, %v691
      %v700 = vpack.c.b16 %v694, %v693
      %v701 = vpack.c.b16 %v696, %v695
      %v702 = vpack.c.b16 %v698, %v697
      %703 = vrot.lane.b32.xlu0 %v312, 126
      %v704 = vpop.permute.xlu0 %703
      %705 = vrot.lane.b32.xlu0 %v320, 126
      %v706 = vpop.permute.xlu0 %705
      %707 = vrot.lane.b32.xlu0 %v319, 126
      %v708 = vpop.permute.xlu0 %707
      %709 = vrot.lane.b32.xlu0 %v321, 126
      %v710 = vpop.permute.xlu0 %709
      %vm711 = vcmask 1031168
      %v712 = vsel %vm711, %v704, %v706
      %v713 = vsel %vm711, %v706, %v708
      %v714 = vsel %vm711, %v708, %v710
      %v716 = vsel %vm334, %v699, 0
      %v719 = vsel %vm334, %v700, 0
      %v722 = vsel %vm334, %v701, 0
      %v725 = vsel %vm334, %v702, 0
      %v728 = vsel %vm347, %v712, 0
      %v731 = vsel %vm347, %v713, 0
      %v734 = vsel %vm347, %v714, 0
      %736 = vmatprep.subr.bf16.mxu0 0
      %737 = vmatpush1.bf16.msra.mxu0 0
      %738 = vmatprep.subr.bf16.mxu0 0
      %739 = vmatpush1.bf16.msra.mxu0 0
      %740 = vmatprep.subr.bf16.mxu0 0
      %741 = vmatpush1.bf16.msra.mxu0 0
      %742 = vmatprep.subr.bf16.mxu0 0
      %743 = vmatpush1.bf16.msra.mxu0 0
      %744 = vmatprep.subr.bf16.mxu0 0
      %745 = vmatpush1.bf16.msra.mxu0 0
      %746 = vmatprep.subr.bf16.mxu0 0
      %747 = vmatpush1.bf16.msra.mxu0 0
      %748 = vmatprep.subr.bf16.mxu0 0
      %749 = vmatpush1.bf16.msra.mxu0 0
      %750 = vmatprep.subr.bf16.mxu0 %v731
      %751 = vmatpush1.bf16.msra.mxu0 %v728
      %752 = vmatprep.subr.bf16.mxu0 0
      %753 = vmatpush2.bf16.msra.mxu0 0
      %754 = vmatprep.subr.bf16.mxu0 0
      %755 = vmatpush2.bf16.msra.mxu0 0
      %756 = vmatprep.subr.bf16.mxu0 0
      %757 = vmatpush2.bf16.msra.mxu0 0
      %758 = vmatprep.subr.bf16.mxu0 0
      %759 = vmatpush2.bf16.msra.mxu0 0
      %760 = vmatprep.subr.bf16.mxu0 0
      %761 = vmatpush2.bf16.msra.mxu0 0
      %762 = vmatprep.subr.bf16.mxu0 0
      %763 = vmatpush2.bf16.msra.mxu0 0
      %764 = vmatprep.subr.bf16.mxu0 0
      %765 = vmatpush2.bf16.msra.mxu0 0
      %766 = vmatprep.subr.bf16.mxu0 0
      %767 = vmatpush2.bf16.msra.mxu0 0
      %768 = vmatprep.mubr.bf16.mxu0 0
      %769 = vmatmul.mubr.bf16.gmra.mxu0 %v716
      %v770 = vpop.f32.mrf.mxu0
      %v771 = vadd.f32 0.0, %v770
      %v772 = vpop.f32.mrf.mxu0
      %v773 = vadd.f32 0.0, %v772
      %v774 = vpop.f32.mrf.mxu0
      %v775 = vadd.f32 0.0, %v774
      %v776 = vpop.f32.mrf.mxu0
      %v777 = vadd.f32 0.0, %v776
      %778 = vmatprep.mubr.bf16.mxu0 0
      %779 = vmatmul.mubr.bf16.gmra.mxu0 %v719
      %v780 = vpop.f32.mrf.mxu0
      %v781 = vadd.f32 0.0, %v780
      %v782 = vpop.f32.mrf.mxu0
      %v783 = vadd.f32 0.0, %v782
      %v784 = vpop.f32.mrf.mxu0
      %v785 = vadd.f32 0.0, %v784
      %v786 = vpop.f32.mrf.mxu0
      %v787 = vadd.f32 0.0, %v786
      %788 = vmatprep.mubr.bf16.mxu0 0
      %789 = vmatmul.mubr.bf16.gmra.mxu0 %v722
      %v790 = vpop.f32.mrf.mxu0
      %v791 = vadd.f32 0.0, %v790
      %v792 = vpop.f32.mrf.mxu0
      %v793 = vadd.f32 0.0, %v792
      %v794 = vpop.f32.mrf.mxu0
      %v795 = vadd.f32 0.0, %v794
      %v796 = vpop.f32.mrf.mxu0
      %v797 = vadd.f32 0.0, %v796
      %798 = vmatprep.mubr.bf16.mxu0 0
      %799 = vmatmul.mubr.bf16.gmra.mxu0 %v725
      %v800 = vpop.f32.mrf.mxu0
      %v801 = vadd.f32 0.0, %v800
      %v802 = vpop.f32.mrf.mxu0
      %v803 = vadd.f32 0.0, %v802
      %v804 = vpop.f32.mrf.mxu0
      %v805 = vadd.f32 0.0, %v804
      %v806 = vpop.f32.mrf.mxu0
      %v807 = vadd.f32 0.0, %v806
      %808 = vdwg.mxu0
      %809 = vmatprep.subr.bf16.mxu0 0
      %810 = vmatpush1.bf16.msra.mxu0 0
      %811 = vmatprep.subr.bf16.mxu0 0
      %812 = vmatpush1.bf16.msra.mxu0 0
      %813 = vmatprep.subr.bf16.mxu0 0
      %814 = vmatpush1.bf16.msra.mxu0 0
      %815 = vmatprep.subr.bf16.mxu0 0
      %816 = vmatpush1.bf16.msra.mxu0 0
      %817 = vmatprep.subr.bf16.mxu0 0
      %818 = vmatpush1.bf16.msra.mxu0 0
      %819 = vmatprep.subr.bf16.mxu0 0
      %820 = vmatpush1.bf16.msra.mxu0 0
      %821 = vmatprep.subr.bf16.mxu0 0
      %822 = vmatpush1.bf16.msra.mxu0 0
      %823 = vmatprep.subr.bf16.mxu0 0
      %824 = vmatpush1.bf16.msra.mxu0 %v734
      %825 = vmatprep.subr.bf16.mxu0 0
      %826 = vmatpush2.bf16.msra.mxu0 0
      %827 = vmatprep.subr.bf16.mxu0 0
      %828 = vmatpush2.bf16.msra.mxu0 0
      %829 = vmatprep.subr.bf16.mxu0 0
      %830 = vmatpush2.bf16.msra.mxu0 0
      %831 = vmatprep.subr.bf16.mxu0 0
      %832 = vmatpush2.bf16.msra.mxu0 0
      %833 = vmatprep.subr.bf16.mxu0 0
      %834 = vmatpush2.bf16.msra.mxu0 0
      %835 = vmatprep.subr.bf16.mxu0 0
      %836 = vmatpush2.bf16.msra.mxu0 0
      %837 = vmatprep.subr.bf16.mxu0 0
      %838 = vmatpush2.bf16.msra.mxu0 0
      %839 = vmatprep.subr.bf16.mxu0 0
      %840 = vmatpush2.bf16.msra.mxu0 0
      %841 = vmatprep.mubr.bf16.mxu0 0
      %842 = vmatmul.mubr.bf16.gmra.mxu0 %v716
      %v843 = vpop.f32.mrf.mxu0
      %v844 = vadd.f32 0.0, %v843
      %v845 = vpop.f32.mrf.mxu0
      %v846 = vpop.f32.mrf.mxu0
      %v847 = vadd.f32 0.0, %v846
      %v848 = vpop.f32.mrf.mxu0
      %849 = vmatprep.mubr.bf16.mxu0 0
      %850 = vmatmul.mubr.bf16.gmra.mxu0 %v719
      %v851 = vpop.f32.mrf.mxu0
      %v852 = vadd.f32 0.0, %v851
      %v853 = vpop.f32.mrf.mxu0
      %v854 = vpop.f32.mrf.mxu0
      %v855 = vadd.f32 0.0, %v854
      %v856 = vpop.f32.mrf.mxu0
      %857 = vmatprep.mubr.bf16.mxu0 0
      %858 = vmatmul.mubr.bf16.gmra.mxu0 %v722
      %v859 = vpop.f32.mrf.mxu0
      %v860 = vadd.f32 0.0, %v859
      %v861 = vpop.f32.mrf.mxu0
      %v862 = vpop.f32.mrf.mxu0
      %v863 = vadd.f32 0.0, %v862
      %v864 = vpop.f32.mrf.mxu0
      %865 = vmatprep.mubr.bf16.mxu0 0
      %866 = vmatmul.mubr.bf16.gmra.mxu0 %v725
      %v867 = vpop.f32.mrf.mxu0
      %v868 = vadd.f32 0.0, %v867
      %v869 = vpop.f32.mrf.mxu0
      %v870 = vpop.f32.mrf.mxu0
      %v871 = vadd.f32 0.0, %v870
      %v872 = vpop.f32.mrf.mxu0
      %873 = vdwg.mxu0
      %v874 = vadd.f32 %v571, %v771
      %v875 = vadd.f32 %v573, %v773
      %v876 = vadd.f32 %v644, %v844
      %v877 = vadd.f32 %v575, %v775
      %v878 = vadd.f32 %v577, %v777
      %v879 = vadd.f32 %v647, %v847
      %v880 = vadd.f32 %v581, %v781
      %v881 = vadd.f32 %v583, %v783
      %v882 = vadd.f32 %v652, %v852
      %v883 = vadd.f32 %v585, %v785
      %v884 = vadd.f32 %v587, %v787
      %v885 = vadd.f32 %v655, %v855
      %v886 = vadd.f32 %v591, %v791
      %v887 = vadd.f32 %v593, %v793
      %v888 = vadd.f32 %v660, %v860
      %v889 = vadd.f32 %v595, %v795
      %v890 = vadd.f32 %v597, %v797
      %v891 = vadd.f32 %v663, %v863
      %v892 = vadd.f32 %v601, %v801
      %v893 = vadd.f32 %v603, %v803
      %v894 = vadd.f32 %v668, %v868
      %v895 = vadd.f32 %v605, %v805
      %v896 = vadd.f32 %v607, %v807
      %v897 = vadd.f32 %v671, %v871
      %s898 = scalar_lea.vmem %s1, 96
      %v899 = vld [vmem:[%s898] sm:$0xf]
      %v900 = vld [vmem:[%s898 + $0x4] sm:$0xf]
      %v901 = vld [vmem:[%s898 + $0x8] sm:$0xf]
      %v902 = vld [vmem:[%s898 + $0xc] sm:$0xf]
      %v903 = vld [vmem:[%s898 + $0x10] sm:$0xf]
      %v904 = vld [vmem:[%s898 + $0x14] sm:$0xf]
      %v905 = vld [vmem:[%s898 + $0x18] sm:$0xf]
      %v906 = vld [vmem:[%s898 + $0x1c] sm:$0xf]
      %v915 = vunpack.c.l.b16 %v899
      %v916 = vunpack.c.l.b16 %v900
      %v917 = vunpack.c.l.b16 %v901
      %v918 = vunpack.c.l.b16 %v902
      %v919 = vunpack.c.l.b16 %v903
      %v920 = vunpack.c.l.b16 %v904
      %v921 = vunpack.c.l.b16 %v905
      %v922 = vunpack.c.l.b16 %v906
      %v923 = vpack.c.b16 %v916, %v915
      %v924 = vpack.c.b16 %v918, %v917
      %v925 = vpack.c.b16 %v920, %v919
      %v926 = vpack.c.b16 %v922, %v921
      %927 = vrot.lane.b32.xlu0 %v312, 104
      %v928 = vpop.permute.xlu0 %927
      %929 = vrot.lane.b32.xlu0 %v320, 104
      %v930 = vpop.permute.xlu0 %929
      %931 = vrot.lane.b32.xlu0 %v319, 104
      %v932 = vpop.permute.xlu0 %931
      %933 = vrot.lane.b32.xlu0 %v321, 104
      %v934 = vpop.permute.xlu0 %933
      %vm935 = vcmask 850944
      %v936 = vsel %vm935, %v928, %v930
      %v937 = vsel %vm935, %v930, %v932
      %v938 = vsel %vm935, %v932, %v934
      %v940 = vsel %vm334, %v923, 0
      %v943 = vsel %vm334, %v924, 0
      %v946 = vsel %vm334, %v925, 0
      %v949 = vsel %vm334, %v926, 0
      %v952 = vsel %vm347, %v936, 0
      %v955 = vsel %vm347, %v937, 0
      %v958 = vsel %vm347, %v938, 0
      %960 = vmatprep.subr.bf16.mxu0 0
      %961 = vmatpush1.bf16.msra.mxu0 0
      %962 = vmatprep.subr.bf16.mxu0 0
      %963 = vmatpush1.bf16.msra.mxu0 0
      %964 = vmatprep.subr.bf16.mxu0 0
      %965 = vmatpush1.bf16.msra.mxu0 0
      %966 = vmatprep.subr.bf16.mxu0 0
      %967 = vmatpush1.bf16.msra.mxu0 0
      %968 = vmatprep.subr.bf16.mxu0 0
      %969 = vmatpush1.bf16.msra.mxu0 0
      %970 = vmatprep.subr.bf16.mxu0 0
      %971 = vmatpush1.bf16.msra.mxu0 0
      %972 = vmatprep.subr.bf16.mxu0 0
      %973 = vmatpush1.bf16.msra.mxu0 0
      %974 = vmatprep.subr.bf16.mxu0 %v955
      %975 = vmatpush1.bf16.msra.mxu0 %v952
      %976 = vmatprep.subr.bf16.mxu0 0
      %977 = vmatpush2.bf16.msra.mxu0 0
      %978 = vmatprep.subr.bf16.mxu0 0
      %979 = vmatpush2.bf16.msra.mxu0 0
      %980 = vmatprep.subr.bf16.mxu0 0
      %981 = vmatpush2.bf16.msra.mxu0 0
      %982 = vmatprep.subr.bf16.mxu0 0
      %983 = vmatpush2.bf16.msra.mxu0 0
      %984 = vmatprep.subr.bf16.mxu0 0
      %985 = vmatpush2.bf16.msra.mxu0 0
      %986 = vmatprep.subr.bf16.mxu0 0
      %987 = vmatpush2.bf16.msra.mxu0 0
      %988 = vmatprep.subr.bf16.mxu0 0
      %989 = vmatpush2.bf16.msra.mxu0 0
      %990 = vmatprep.subr.bf16.mxu0 0
      %991 = vmatpush2.bf16.msra.mxu0 0
      %992 = vmatprep.mubr.bf16.mxu0 0
      %993 = vmatmul.mubr.bf16.gmra.mxu0 %v940
      %v994 = vpop.f32.mrf.mxu0
      %v995 = vadd.f32 0.0, %v994
      %v996 = vpop.f32.mrf.mxu0
      %v997 = vadd.f32 0.0, %v996
      %v998 = vpop.f32.mrf.mxu0
      %v999 = vadd.f32 0.0, %v998
      %v1000 = vpop.f32.mrf.mxu0
      %v1001 = vadd.f32 0.0, %v1000
      %1002 = vmatprep.mubr.bf16.mxu0 0
      %1003 = vmatmul.mubr.bf16.gmra.mxu0 %v943
      %v1004 = vpop.f32.mrf.mxu0
      %v1005 = vadd.f32 0.0, %v1004
      %v1006 = vpop.f32.mrf.mxu0
      %v1007 = vadd.f32 0.0, %v1006
      %v1008 = vpop.f32.mrf.mxu0
      %v1009 = vadd.f32 0.0, %v1008
      %v1010 = vpop.f32.mrf.mxu0
      %v1011 = vadd.f32 0.0, %v1010
      %1012 = vmatprep.mubr.bf16.mxu0 0
      %1013 = vmatmul.mubr.bf16.gmra.mxu0 %v946
      %v1014 = vpop.f32.mrf.mxu0
      %v1015 = vadd.f32 0.0, %v1014
      %v1016 = vpop.f32.mrf.mxu0
      %v1017 = vadd.f32 0.0, %v1016
      %v1018 = vpop.f32.mrf.mxu0
      %v1019 = vadd.f32 0.0, %v1018
      %v1020 = vpop.f32.mrf.mxu0
      %v1021 = vadd.f32 0.0, %v1020
      %1022 = vmatprep.mubr.bf16.mxu0 0
      %1023 = vmatmul.mubr.bf16.gmra.mxu0 %v949
      %v1024 = vpop.f32.mrf.mxu0
      %v1025 = vadd.f32 0.0, %v1024
      %v1026 = vpop.f32.mrf.mxu0
      %v1027 = vadd.f32 0.0, %v1026
      %v1028 = vpop.f32.mrf.mxu0
      %v1029 = vadd.f32 0.0, %v1028
      %v1030 = vpop.f32.mrf.mxu0
      %v1031 = vadd.f32 0.0, %v1030
      %1032 = vdwg.mxu0
      %1033 = vmatprep.subr.bf16.mxu0 0
      %1034 = vmatpush1.bf16.msra.mxu0 0
      %1035 = vmatprep.subr.bf16.mxu0 0
      %1036 = vmatpush1.bf16.msra.mxu0 0
      %1037 = vmatprep.subr.bf16.mxu0 0
      %1038 = vmatpush1.bf16.msra.mxu0 0
      %1039 = vmatprep.subr.bf16.mxu0 0
      %1040 = vmatpush1.bf16.msra.mxu0 0
      %1041 = vmatprep.subr.bf16.mxu0 0
      %1042 = vmatpush1.bf16.msra.mxu0 0
      %1043 = vmatprep.subr.bf16.mxu0 0
      %1044 = vmatpush1.bf16.msra.mxu0 0
      %1045 = vmatprep.subr.bf16.mxu0 0
      %1046 = vmatpush1.bf16.msra.mxu0 0
      %1047 = vmatprep.subr.bf16.mxu0 0
      %1048 = vmatpush1.bf16.msra.mxu0 %v958
      %1049 = vmatprep.subr.bf16.mxu0 0
      %1050 = vmatpush2.bf16.msra.mxu0 0
      %1051 = vmatprep.subr.bf16.mxu0 0
      %1052 = vmatpush2.bf16.msra.mxu0 0
      %1053 = vmatprep.subr.bf16.mxu0 0
      %1054 = vmatpush2.bf16.msra.mxu0 0
      %1055 = vmatprep.subr.bf16.mxu0 0
      %1056 = vmatpush2.bf16.msra.mxu0 0
      %1057 = vmatprep.subr.bf16.mxu0 0
      %1058 = vmatpush2.bf16.msra.mxu0 0
      %1059 = vmatprep.subr.bf16.mxu0 0
      %1060 = vmatpush2.bf16.msra.mxu0 0
      %1061 = vmatprep.subr.bf16.mxu0 0
      %1062 = vmatpush2.bf16.msra.mxu0 0
      %1063 = vmatprep.subr.bf16.mxu0 0
      %1064 = vmatpush2.bf16.msra.mxu0 0
      %1065 = vmatprep.mubr.bf16.mxu0 0
      %1066 = vmatmul.mubr.bf16.gmra.mxu0 %v940
      %v1067 = vpop.f32.mrf.mxu0
      %v1068 = vadd.f32 0.0, %v1067
      %v1069 = vpop.f32.mrf.mxu0
      %v1070 = vpop.f32.mrf.mxu0
      %v1071 = vadd.f32 0.0, %v1070
      %v1072 = vpop.f32.mrf.mxu0
      %1073 = vmatprep.mubr.bf16.mxu0 0
      %1074 = vmatmul.mubr.bf16.gmra.mxu0 %v943
      %v1075 = vpop.f32.mrf.mxu0
      %v1076 = vadd.f32 0.0, %v1075
      %v1077 = vpop.f32.mrf.mxu0
      %v1078 = vpop.f32.mrf.mxu0
      %v1079 = vadd.f32 0.0, %v1078
      %v1080 = vpop.f32.mrf.mxu0
      %1081 = vmatprep.mubr.bf16.mxu0 0
      %1082 = vmatmul.mubr.bf16.gmra.mxu0 %v946
      %v1083 = vpop.f32.mrf.mxu0
      %v1084 = vadd.f32 0.0, %v1083
      %v1085 = vpop.f32.mrf.mxu0
      %v1086 = vpop.f32.mrf.mxu0
      %v1087 = vadd.f32 0.0, %v1086
      %v1088 = vpop.f32.mrf.mxu0
      %1089 = vmatprep.mubr.bf16.mxu0 0
      %1090 = vmatmul.mubr.bf16.gmra.mxu0 %v949
      %v1091 = vpop.f32.mrf.mxu0
      %v1092 = vadd.f32 0.0, %v1091
      %v1093 = vpop.f32.mrf.mxu0
      %v1094 = vpop.f32.mrf.mxu0
      %v1095 = vadd.f32 0.0, %v1094
      %v1096 = vpop.f32.mrf.mxu0
      %1097 = vdwg.mxu0
      %v1098 = vadd.f32 %v874, %v995
      %v1099 = vadd.f32 %v875, %v997
      %v1100 = vadd.f32 %v876, %v1068
      %v1101 = vadd.f32 %v877, %v999
      %v1102 = vadd.f32 %v878, %v1001
      %v1103 = vadd.f32 %v879, %v1071
      %v1104 = vadd.f32 %v880, %v1005
      %v1105 = vadd.f32 %v881, %v1007
      %v1106 = vadd.f32 %v882, %v1076
      %v1107 = vadd.f32 %v883, %v1009
      %v1108 = vadd.f32 %v884, %v1011
      %v1109 = vadd.f32 %v885, %v1079
      %v1110 = vadd.f32 %v886, %v1015
      %v1111 = vadd.f32 %v887, %v1017
      %v1112 = vadd.f32 %v888, %v1084
      %v1113 = vadd.f32 %v889, %v1019
      %v1114 = vadd.f32 %v890, %v1021
      %v1115 = vadd.f32 %v891, %v1087
      %v1116 = vadd.f32 %v892, %v1025
      %v1117 = vadd.f32 %v893, %v1027
      %v1118 = vadd.f32 %v894, %v1092
      %v1119 = vadd.f32 %v895, %v1029
      %v1120 = vadd.f32 %v896, %v1031
      %v1121 = vadd.f32 %v897, %v1095
      %s1122 = scalar_lea.vmem %s1, 128
      %v1123 = vld [vmem:[%s1122] sm:$0xf]
      %v1124 = vld [vmem:[%s1122 + $0x4] sm:$0xf]
      %v1125 = vld [vmem:[%s1122 + $0x8] sm:$0xf]
      %v1126 = vld [vmem:[%s1122 + $0xc] sm:$0xf]
      %v1127 = vld [vmem:[%s1122 + $0x10] sm:$0xf]
      %v1128 = vld [vmem:[%s1122 + $0x14] sm:$0xf]
      %v1129 = vld [vmem:[%s1122 + $0x18] sm:$0xf]
      %v1130 = vld [vmem:[%s1122 + $0x1c] sm:$0xf]
      %v1139 = vunpack.c.l.b16 %v1123
      %v1140 = vunpack.c.l.b16 %v1124
      %v1141 = vunpack.c.l.b16 %v1125
      %v1142 = vunpack.c.l.b16 %v1126
      %v1143 = vunpack.c.l.b16 %v1127
      %v1144 = vunpack.c.l.b16 %v1128
      %v1145 = vunpack.c.l.b16 %v1129
      %v1146 = vunpack.c.l.b16 %v1130
      %v1147 = vpack.c.b16 %v1140, %v1139
      %v1148 = vpack.c.b16 %v1142, %v1141
      %v1149 = vpack.c.b16 %v1144, %v1143
      %v1150 = vpack.c.b16 %v1146, %v1145
      %1151 = vrot.lane.b32.xlu0 %v312, 103
      %v1152 = vpop.permute.xlu0 %1151
      %1153 = vrot.lane.b32.xlu0 %v320, 103
      %v1154 = vpop.permute.xlu0 %1153
      %1155 = vrot.lane.b32.xlu0 %v319, 103
      %v1156 = vpop.permute.xlu0 %1155
      %1157 = vrot.lane.b32.xlu0 %v321, 103
      %v1158 = vpop.permute.xlu0 %1157
      %vm1159 = vcmask 842752
      %v1160 = vsel %vm1159, %v1152, %v1154
      %v1161 = vsel %vm1159, %v1154, %v1156
      %v1162 = vsel %vm1159, %v1156, %v1158
      %v1164 = vsel %vm334, %v1147, 0
      %v1167 = vsel %vm334, %v1148, 0
      %v1170 = vsel %vm334, %v1149, 0
      %v1173 = vsel %vm334, %v1150, 0
      %v1176 = vsel %vm347, %v1160, 0
      %v1179 = vsel %vm347, %v1161, 0
      %v1182 = vsel %vm347, %v1162, 0
      %1184 = vmatprep.subr.bf16.mxu0 0
      %1185 = vmatpush1.bf16.msra.mxu0 0
      %1186 = vmatprep.subr.bf16.mxu0 0
      %1187 = vmatpush1.bf16.msra.mxu0 0
      %1188 = vmatprep.subr.bf16.mxu0 0
      %1189 = vmatpush1.bf16.msra.mxu0 0
      %1190 = vmatprep.subr.bf16.mxu0 0
      %1191 = vmatpush1.bf16.msra.mxu0 0
      %1192 = vmatprep.subr.bf16.mxu0 0
      %1193 = vmatpush1.bf16.msra.mxu0 0
      %1194 = vmatprep.subr.bf16.mxu0 0
      %1195 = vmatpush1.bf16.msra.mxu0 0
      %1196 = vmatprep.subr.bf16.mxu0 0
      %1197 = vmatpush1.bf16.msra.mxu0 0
      %1198 = vmatprep.subr.bf16.mxu0 %v1179
      %1199 = vmatpush1.bf16.msra.mxu0 %v1176
      %1200 = vmatprep.subr.bf16.mxu0 0
      %1201 = vmatpush2.bf16.msra.mxu0 0
      %1202 = vmatprep.subr.bf16.mxu0 0
      %1203 = vmatpush2.bf16.msra.mxu0 0
      %1204 = vmatprep.subr.bf16.mxu0 0
      %1205 = vmatpush2.bf16.msra.mxu0 0
      %1206 = vmatprep.subr.bf16.mxu0 0
      %1207 = vmatpush2.bf16.msra.mxu0 0
      %1208 = vmatprep.subr.bf16.mxu0 0
      %1209 = vmatpush2.bf16.msra.mxu0 0
      %1210 = vmatprep.subr.bf16.mxu0 0
      %1211 = vmatpush2.bf16.msra.mxu0 0
      %1212 = vmatprep.subr.bf16.mxu0 0
      %1213 = vmatpush2.bf16.msra.mxu0 0
      %1214 = vmatprep.subr.bf16.mxu0 0
      %1215 = vmatpush2.bf16.msra.mxu0 0
      %1216 = vmatprep.mubr.bf16.mxu0 0
      %1217 = vmatmul.mubr.bf16.gmra.mxu0 %v1164
      %v1218 = vpop.f32.mrf.mxu0
      %v1219 = vadd.f32 0.0, %v1218
      %v1220 = vpop.f32.mrf.mxu0
      %v1221 = vadd.f32 0.0, %v1220
      %v1222 = vpop.f32.mrf.mxu0
      %v1223 = vadd.f32 0.0, %v1222
      %v1224 = vpop.f32.mrf.mxu0
      %v1225 = vadd.f32 0.0, %v1224
      %1226 = vmatprep.mubr.bf16.mxu0 0
      %1227 = vmatmul.mubr.bf16.gmra.mxu0 %v1167
      %v1228 = vpop.f32.mrf.mxu0
      %v1229 = vadd.f32 0.0, %v1228
      %v1230 = vpop.f32.mrf.mxu0
      %v1231 = vadd.f32 0.0, %v1230
      %v1232 = vpop.f32.mrf.mxu0
      %v1233 = vadd.f32 0.0, %v1232
      %v1234 = vpop.f32.mrf.mxu0
      %v1235 = vadd.f32 0.0, %v1234
      %1236 = vmatprep.mubr.bf16.mxu0 0
      %1237 = vmatmul.mubr.bf16.gmra.mxu0 %v1170
      %v1238 = vpop.f32.mrf.mxu0
      %v1239 = vadd.f32 0.0, %v1238
      %v1240 = vpop.f32.mrf.mxu0
      %v1241 = vadd.f32 0.0, %v1240
      %v1242 = vpop.f32.mrf.mxu0
      %v1243 = vadd.f32 0.0, %v1242
      %v1244 = vpop.f32.mrf.mxu0
      %v1245 = vadd.f32 0.0, %v1244
      %1246 = vmatprep.mubr.bf16.mxu0 0
      %1247 = vmatmul.mubr.bf16.gmra.mxu0 %v1173
      %v1248 = vpop.f32.mrf.mxu0
      %v1249 = vadd.f32 0.0, %v1248
      %v1250 = vpop.f32.mrf.mxu0
      %v1251 = vadd.f32 0.0, %v1250
      %v1252 = vpop.f32.mrf.mxu0
      %v1253 = vadd.f32 0.0, %v1252
      %v1254 = vpop.f32.mrf.mxu0
      %v1255 = vadd.f32 0.0, %v1254
      %1256 = vdwg.mxu0
      %1257 = vmatprep.subr.bf16.mxu0 0
      %1258 = vmatpush1.bf16.msra.mxu0 0
      %1259 = vmatprep.subr.bf16.mxu0 0
      %1260 = vmatpush1.bf16.msra.mxu0 0
      %1261 = vmatprep.subr.bf16.mxu0 0
      %1262 = vmatpush1.bf16.msra.mxu0 0
      %1263 = vmatprep.subr.bf16.mxu0 0
      %1264 = vmatpush1.bf16.msra.mxu0 0
      %1265 = vmatprep.subr.bf16.mxu0 0
      %1266 = vmatpush1.bf16.msra.mxu0 0
      %1267 = vmatprep.subr.bf16.mxu0 0
      %1268 = vmatpush1.bf16.msra.mxu0 0
      %1269 = vmatprep.subr.bf16.mxu0 0
      %1270 = vmatpush1.bf16.msra.mxu0 0
      %1271 = vmatprep.subr.bf16.mxu0 0
      %1272 = vmatpush1.bf16.msra.mxu0 %v1182
      %1273 = vmatprep.subr.bf16.mxu0 0
      %1274 = vmatpush2.bf16.msra.mxu0 0
      %1275 = vmatprep.subr.bf16.mxu0 0
      %1276 = vmatpush2.bf16.msra.mxu0 0
      %1277 = vmatprep.subr.bf16.mxu0 0
      %1278 = vmatpush2.bf16.msra.mxu0 0
      %1279 = vmatprep.subr.bf16.mxu0 0
      %1280 = vmatpush2.bf16.msra.mxu0 0
      %1281 = vmatprep.subr.bf16.mxu0 0
      %1282 = vmatpush2.bf16.msra.mxu0 0
      %1283 = vmatprep.subr.bf16.mxu0 0
      %1284 = vmatpush2.bf16.msra.mxu0 0
      %1285 = vmatprep.subr.bf16.mxu0 0
      %1286 = vmatpush2.bf16.msra.mxu0 0
      %1287 = vmatprep.subr.bf16.mxu0 0
      %1288 = vmatpush2.bf16.msra.mxu0 0
      %1289 = vmatprep.mubr.bf16.mxu0 0
      %1290 = vmatmul.mubr.bf16.gmra.mxu0 %v1164
      %v1291 = vpop.f32.mrf.mxu0
      %v1292 = vadd.f32 0.0, %v1291
      %v1293 = vpop.f32.mrf.mxu0
      %v1294 = vpop.f32.mrf.mxu0
      %v1295 = vadd.f32 0.0, %v1294
      %v1296 = vpop.f32.mrf.mxu0
      %1297 = vmatprep.mubr.bf16.mxu0 0
      %1298 = vmatmul.mubr.bf16.gmra.mxu0 %v1167
      %v1299 = vpop.f32.mrf.mxu0
      %v1300 = vadd.f32 0.0, %v1299
      %v1301 = vpop.f32.mrf.mxu0
      %v1302 = vpop.f32.mrf.mxu0
      %v1303 = vadd.f32 0.0, %v1302
      %v1304 = vpop.f32.mrf.mxu0
      %1305 = vmatprep.mubr.bf16.mxu0 0
      %1306 = vmatmul.mubr.bf16.gmra.mxu0 %v1170
      %v1307 = vpop.f32.mrf.mxu0
      %v1308 = vadd.f32 0.0, %v1307
      %v1309 = vpop.f32.mrf.mxu0
      %v1310 = vpop.f32.mrf.mxu0
      %v1311 = vadd.f32 0.0, %v1310
      %v1312 = vpop.f32.mrf.mxu0
      %1313 = vmatprep.mubr.bf16.mxu0 0
      %1314 = vmatmul.mubr.bf16.gmra.mxu0 %v1173
      %v1315 = vpop.f32.mrf.mxu0
      %v1316 = vadd.f32 0.0, %v1315
      %v1317 = vpop.f32.mrf.mxu0
      %v1318 = vpop.f32.mrf.mxu0
      %v1319 = vadd.f32 0.0, %v1318
      %v1320 = vpop.f32.mrf.mxu0
      %1321 = vdwg.mxu0
      %v1322 = vadd.f32 %v1098, %v1219
      %v1323 = vadd.f32 %v1099, %v1221
      %v1324 = vadd.f32 %v1100, %v1292
      %v1325 = vadd.f32 %v1101, %v1223
      %v1326 = vadd.f32 %v1102, %v1225
      %v1327 = vadd.f32 %v1103, %v1295
      %v1328 = vadd.f32 %v1104, %v1229
      %v1329 = vadd.f32 %v1105, %v1231
      %v1330 = vadd.f32 %v1106, %v1300
      %v1331 = vadd.f32 %v1107, %v1233
      %v1332 = vadd.f32 %v1108, %v1235
      %v1333 = vadd.f32 %v1109, %v1303
      %v1334 = vadd.f32 %v1110, %v1239
      %v1335 = vadd.f32 %v1111, %v1241
      %v1336 = vadd.f32 %v1112, %v1308
      %v1337 = vadd.f32 %v1113, %v1243
      %v1338 = vadd.f32 %v1114, %v1245
      %v1339 = vadd.f32 %v1115, %v1311
      %v1340 = vadd.f32 %v1116, %v1249
      %v1341 = vadd.f32 %v1117, %v1251
      %v1342 = vadd.f32 %v1118, %v1316
      %v1343 = vadd.f32 %v1119, %v1253
      %v1344 = vadd.f32 %v1120, %v1255
      %v1345 = vadd.f32 %v1121, %v1319
      %s1346 = scalar_lea.vmem %s1, 160
      %v1347 = vld [vmem:[%s1346] sm:$0xf]
      %v1348 = vld [vmem:[%s1346 + $0x4] sm:$0xf]
      %v1349 = vld [vmem:[%s1346 + $0x8] sm:$0xf]
      %v1350 = vld [vmem:[%s1346 + $0xc] sm:$0xf]
      %v1351 = vld [vmem:[%s1346 + $0x10] sm:$0xf]
      %v1352 = vld [vmem:[%s1346 + $0x14] sm:$0xf]
      %v1353 = vld [vmem:[%s1346 + $0x18] sm:$0xf]
      %v1354 = vld [vmem:[%s1346 + $0x1c] sm:$0xf]
      %v1363 = vunpack.c.l.b16 %v1347
      %v1364 = vunpack.c.l.b16 %v1348
      %v1365 = vunpack.c.l.b16 %v1349
      %v1366 = vunpack.c.l.b16 %v1350
      %v1367 = vunpack.c.l.b16 %v1351
      %v1368 = vunpack.c.l.b16 %v1352
      %v1369 = vunpack.c.l.b16 %v1353
      %v1370 = vunpack.c.l.b16 %v1354
      %v1371 = vpack.c.b16 %v1364, %v1363
      %v1372 = vpack.c.b16 %v1366, %v1365
      %v1373 = vpack.c.b16 %v1368, %v1367
      %v1374 = vpack.c.b16 %v1370, %v1369
      %1375 = vrot.lane.b32.xlu0 %v312, 102
      %v1376 = vpop.permute.xlu0 %1375
      %1377 = vrot.lane.b32.xlu0 %v320, 102
      %v1378 = vpop.permute.xlu0 %1377
      %1379 = vrot.lane.b32.xlu0 %v319, 102
      %v1380 = vpop.permute.xlu0 %1379
      %1381 = vrot.lane.b32.xlu0 %v321, 102
      %v1382 = vpop.permute.xlu0 %1381
      %vm1383 = vcmask 834560
      %v1384 = vsel %vm1383, %v1376, %v1378
      %v1385 = vsel %vm1383, %v1378, %v1380
      %v1386 = vsel %vm1383, %v1380, %v1382
      %v1388 = vsel %vm334, %v1371, 0
      %v1391 = vsel %vm334, %v1372, 0
      %v1394 = vsel %vm334, %v1373, 0
      %v1397 = vsel %vm334, %v1374, 0
      %v1400 = vsel %vm347, %v1384, 0
      %v1403 = vsel %vm347, %v1385, 0
      %v1406 = vsel %vm347, %v1386, 0
      %1408 = vmatprep.subr.bf16.mxu0 0
      %1409 = vmatpush1.bf16.msra.mxu0 0
      %1410 = vmatprep.subr.bf16.mxu0 0
      %1411 = vmatpush1.bf16.msra.mxu0 0
      %1412 = vmatprep.subr.bf16.mxu0 0
      %1413 = vmatpush1.bf16.msra.mxu0 0
      %1414 = vmatprep.subr.bf16.mxu0 0
      %1415 = vmatpush1.bf16.msra.mxu0 0
      %1416 = vmatprep.subr.bf16.mxu0 0
      %1417 = vmatpush1.bf16.msra.mxu0 0
      %1418 = vmatprep.subr.bf16.mxu0 0
      %1419 = vmatpush1.bf16.msra.mxu0 0
      %1420 = vmatprep.subr.bf16.mxu0 0
      %1421 = vmatpush1.bf16.msra.mxu0 0
      %1422 = vmatprep.subr.bf16.mxu0 %v1403
      %1423 = vmatpush1.bf16.msra.mxu0 %v1400
      %1424 = vmatprep.subr.bf16.mxu0 0
      %1425 = vmatpush2.bf16.msra.mxu0 0
      %1426 = vmatprep.subr.bf16.mxu0 0
      %1427 = vmatpush2.bf16.msra.mxu0 0
      %1428 = vmatprep.subr.bf16.mxu0 0
      %1429 = vmatpush2.bf16.msra.mxu0 0
      %1430 = vmatprep.subr.bf16.mxu0 0
      %1431 = vmatpush2.bf16.msra.mxu0 0
      %1432 = vmatprep.subr.bf16.mxu0 0
      %1433 = vmatpush2.bf16.msra.mxu0 0
      %1434 = vmatprep.subr.bf16.mxu0 0
      %1435 = vmatpush2.bf16.msra.mxu0 0
      %1436 = vmatprep.subr.bf16.mxu0 0
      %1437 = vmatpush2.bf16.msra.mxu0 0
      %1438 = vmatprep.subr.bf16.mxu0 0
      %1439 = vmatpush2.bf16.msra.mxu0 0
      %1440 = vmatprep.mubr.bf16.mxu0 0
      %1441 = vmatmul.mubr.bf16.gmra.mxu0 %v1388
      %v1442 = vpop.f32.mrf.mxu0
      %v1443 = vadd.f32 0.0, %v1442
      %v1444 = vpop.f32.mrf.mxu0
      %v1445 = vadd.f32 0.0, %v1444
      %v1446 = vpop.f32.mrf.mxu0
      %v1447 = vadd.f32 0.0, %v1446
      %v1448 = vpop.f32.mrf.mxu0
      %v1449 = vadd.f32 0.0, %v1448
      %1450 = vmatprep.mubr.bf16.mxu0 0
      %1451 = vmatmul.mubr.bf16.gmra.mxu0 %v1391
      %v1452 = vpop.f32.mrf.mxu0
      %v1453 = vadd.f32 0.0, %v1452
      %v1454 = vpop.f32.mrf.mxu0
      %v1455 = vadd.f32 0.0, %v1454
      %v1456 = vpop.f32.mrf.mxu0
      %v1457 = vadd.f32 0.0, %v1456
      %v1458 = vpop.f32.mrf.mxu0
      %v1459 = vadd.f32 0.0, %v1458
      %1460 = vmatprep.mubr.bf16.mxu0 0
      %1461 = vmatmul.mubr.bf16.gmra.mxu0 %v1394
      %v1462 = vpop.f32.mrf.mxu0
      %v1463 = vadd.f32 0.0, %v1462
      %v1464 = vpop.f32.mrf.mxu0
      %v1465 = vadd.f32 0.0, %v1464
      %v1466 = vpop.f32.mrf.mxu0
      %v1467 = vadd.f32 0.0, %v1466
      %v1468 = vpop.f32.mrf.mxu0
      %v1469 = vadd.f32 0.0, %v1468
      %1470 = vmatprep.mubr.bf16.mxu0 0
      %1471 = vmatmul.mubr.bf16.gmra.mxu0 %v1397
      %v1472 = vpop.f32.mrf.mxu0
      %v1473 = vadd.f32 0.0, %v1472
      %v1474 = vpop.f32.mrf.mxu0
      %v1475 = vadd.f32 0.0, %v1474
      %v1476 = vpop.f32.mrf.mxu0
      %v1477 = vadd.f32 0.0, %v1476
      %v1478 = vpop.f32.mrf.mxu0
      %v1479 = vadd.f32 0.0, %v1478
      %1480 = vdwg.mxu0
      %1481 = vmatprep.subr.bf16.mxu0 0
      %1482 = vmatpush1.bf16.msra.mxu0 0
      %1483 = vmatprep.subr.bf16.mxu0 0
      %1484 = vmatpush1.bf16.msra.mxu0 0
      %1485 = vmatprep.subr.bf16.mxu0 0
      %1486 = vmatpush1.bf16.msra.mxu0 0
      %1487 = vmatprep.subr.bf16.mxu0 0
      %1488 = vmatpush1.bf16.msra.mxu0 0
      %1489 = vmatprep.subr.bf16.mxu0 0
      %1490 = vmatpush1.bf16.msra.mxu0 0
      %1491 = vmatprep.subr.bf16.mxu0 0
      %1492 = vmatpush1.bf16.msra.mxu0 0
      %1493 = vmatprep.subr.bf16.mxu0 0
      %1494 = vmatpush1.bf16.msra.mxu0 0
      %1495 = vmatprep.subr.bf16.mxu0 0
      %1496 = vmatpush1.bf16.msra.mxu0 %v1406
      %1497 = vmatprep.subr.bf16.mxu0 0
      %1498 = vmatpush2.bf16.msra.mxu0 0
      %1499 = vmatprep.subr.bf16.mxu0 0
      %1500 = vmatpush2.bf16.msra.mxu0 0
      %1501 = vmatprep.subr.bf16.mxu0 0
      %1502 = vmatpush2.bf16.msra.mxu0 0
      %1503 = vmatprep.subr.bf16.mxu0 0
      %1504 = vmatpush2.bf16.msra.mxu0 0
      %1505 = vmatprep.subr.bf16.mxu0 0
      %1506 = vmatpush2.bf16.msra.mxu0 0
      %1507 = vmatprep.subr.bf16.mxu0 0
      %1508 = vmatpush2.bf16.msra.mxu0 0
      %1509 = vmatprep.subr.bf16.mxu0 0
      %1510 = vmatpush2.bf16.msra.mxu0 0
      %1511 = vmatprep.subr.bf16.mxu0 0
      %1512 = vmatpush2.bf16.msra.mxu0 0
      %1513 = vmatprep.mubr.bf16.mxu0 0
      %1514 = vmatmul.mubr.bf16.gmra.mxu0 %v1388
      %v1515 = vpop.f32.mrf.mxu0
      %v1516 = vadd.f32 0.0, %v1515
      %v1517 = vpop.f32.mrf.mxu0
      %v1518 = vpop.f32.mrf.mxu0
      %v1519 = vadd.f32 0.0, %v1518
      %v1520 = vpop.f32.mrf.mxu0
      %1521 = vmatprep.mubr.bf16.mxu0 0
      %1522 = vmatmul.mubr.bf16.gmra.mxu0 %v1391
      %v1523 = vpop.f32.mrf.mxu0
      %v1524 = vadd.f32 0.0, %v1523
      %v1525 = vpop.f32.mrf.mxu0
      %v1526 = vpop.f32.mrf.mxu0
      %v1527 = vadd.f32 0.0, %v1526
      %v1528 = vpop.f32.mrf.mxu0
      %1529 = vmatprep.mubr.bf16.mxu0 0
      %1530 = vmatmul.mubr.bf16.gmra.mxu0 %v1394
      %v1531 = vpop.f32.mrf.mxu0
      %v1532 = vadd.f32 0.0, %v1531
      %v1533 = vpop.f32.mrf.mxu0
      %v1534 = vpop.f32.mrf.mxu0
      %v1535 = vadd.f32 0.0, %v1534
      %v1536 = vpop.f32.mrf.mxu0
      %1537 = vmatprep.mubr.bf16.mxu0 0
      %1538 = vmatmul.mubr.bf16.gmra.mxu0 %v1397
      %v1539 = vpop.f32.mrf.mxu0
      %v1540 = vadd.f32 0.0, %v1539
      %v1541 = vpop.f32.mrf.mxu0
      %v1542 = vpop.f32.mrf.mxu0
      %v1543 = vadd.f32 0.0, %v1542
      %v1544 = vpop.f32.mrf.mxu0
      %1545 = vdwg.mxu0
      %v1546 = vadd.f32 %v1322, %v1443
      %v1547 = vadd.f32 %v1323, %v1445
      %v1548 = vadd.f32 %v1324, %v1516
      %v1549 = vadd.f32 %v1325, %v1447
      %v1550 = vadd.f32 %v1326, %v1449
      %v1551 = vadd.f32 %v1327, %v1519
      %v1552 = vadd.f32 %v1328, %v1453
      %v1553 = vadd.f32 %v1329, %v1455
      %v1554 = vadd.f32 %v1330, %v1524
      %v1555 = vadd.f32 %v1331, %v1457
      %v1556 = vadd.f32 %v1332, %v1459
      %v1557 = vadd.f32 %v1333, %v1527
      %v1558 = vadd.f32 %v1334, %v1463
      %v1559 = vadd.f32 %v1335, %v1465
      %v1560 = vadd.f32 %v1336, %v1532
      %v1561 = vadd.f32 %v1337, %v1467
      %v1562 = vadd.f32 %v1338, %v1469
      %v1563 = vadd.f32 %v1339, %v1535
      %v1564 = vadd.f32 %v1340, %v1473
      %v1565 = vadd.f32 %v1341, %v1475
      %v1566 = vadd.f32 %v1342, %v1540
      %v1567 = vadd.f32 %v1343, %v1477
      %v1568 = vadd.f32 %v1344, %v1479
      %v1569 = vadd.f32 %v1345, %v1543
      %s1570 = scalar_lea.vmem %s1, 192
      %v1571 = vld [vmem:[%s1570] sm:$0xf]
      %v1572 = vld [vmem:[%s1570 + $0x4] sm:$0xf]
      %v1573 = vld [vmem:[%s1570 + $0x8] sm:$0xf]
      %v1574 = vld [vmem:[%s1570 + $0xc] sm:$0xf]
      %v1575 = vld [vmem:[%s1570 + $0x10] sm:$0xf]
      %v1576 = vld [vmem:[%s1570 + $0x14] sm:$0xf]
      %v1577 = vld [vmem:[%s1570 + $0x18] sm:$0xf]
      %v1578 = vld [vmem:[%s1570 + $0x1c] sm:$0xf]
      %v1587 = vunpack.c.l.b16 %v1571
      %v1588 = vunpack.c.l.b16 %v1572
      %v1589 = vunpack.c.l.b16 %v1573
      %v1590 = vunpack.c.l.b16 %v1574
      %v1591 = vunpack.c.l.b16 %v1575
      %v1592 = vunpack.c.l.b16 %v1576
      %v1593 = vunpack.c.l.b16 %v1577
      %v1594 = vunpack.c.l.b16 %v1578
      %v1595 = vpack.c.b16 %v1588, %v1587
      %v1596 = vpack.c.b16 %v1590, %v1589
      %v1597 = vpack.c.b16 %v1592, %v1591
      %v1598 = vpack.c.b16 %v1594, %v1593
      %1599 = vrot.lane.b32.xlu0 %v312, 80
      %v1600 = vpop.permute.xlu0 %1599
      %1601 = vrot.lane.b32.xlu0 %v320, 80
      %v1602 = vpop.permute.xlu0 %1601
      %1603 = vrot.lane.b32.xlu0 %v319, 80
      %v1604 = vpop.permute.xlu0 %1603
      %1605 = vrot.lane.b32.xlu0 %v321, 80
      %v1606 = vpop.permute.xlu0 %1605
      %vm1607 = vcmask 654336
      %v1608 = vsel %vm1607, %v1600, %v1602
      %v1609 = vsel %vm1607, %v1602, %v1604
      %v1610 = vsel %vm1607, %v1604, %v1606
      %v1612 = vsel %vm334, %v1595, 0
      %v1615 = vsel %vm334, %v1596, 0
      %v1618 = vsel %vm334, %v1597, 0
      %v1621 = vsel %vm334, %v1598, 0
      %v1624 = vsel %vm347, %v1608, 0
      %v1627 = vsel %vm347, %v1609, 0
      %v1630 = vsel %vm347, %v1610, 0
      %1632 = vmatprep.subr.bf16.mxu0 0
      %1633 = vmatpush1.bf16.msra.mxu0 0
      %1634 = vmatprep.subr.bf16.mxu0 0
      %1635 = vmatpush1.bf16.msra.mxu0 0
      %1636 = vmatprep.subr.bf16.mxu0 0
      %1637 = vmatpush1.bf16.msra.mxu0 0
      %1638 = vmatprep.subr.bf16.mxu0 0
      %1639 = vmatpush1.bf16.msra.mxu0 0
      %1640 = vmatprep.subr.bf16.mxu0 0
      %1641 = vmatpush1.bf16.msra.mxu0 0
      %1642 = vmatprep.subr.bf16.mxu0 0
      %1643 = vmatpush1.bf16.msra.mxu0 0
      %1644 = vmatprep.subr.bf16.mxu0 0
      %1645 = vmatpush1.bf16.msra.mxu0 0
      %1646 = vmatprep.subr.bf16.mxu0 %v1627
      %1647 = vmatpush1.bf16.msra.mxu0 %v1624
      %1648 = vmatprep.subr.bf16.mxu0 0
      %1649 = vmatpush2.bf16.msra.mxu0 0
      %1650 = vmatprep.subr.bf16.mxu0 0
      %1651 = vmatpush2.bf16.msra.mxu0 0
      %1652 = vmatprep.subr.bf16.mxu0 0
      %1653 = vmatpush2.bf16.msra.mxu0 0
      %1654 = vmatprep.subr.bf16.mxu0 0
      %1655 = vmatpush2.bf16.msra.mxu0 0
      %1656 = vmatprep.subr.bf16.mxu0 0
      %1657 = vmatpush2.bf16.msra.mxu0 0
      %1658 = vmatprep.subr.bf16.mxu0 0
      %1659 = vmatpush2.bf16.msra.mxu0 0
      %1660 = vmatprep.subr.bf16.mxu0 0
      %1661 = vmatpush2.bf16.msra.mxu0 0
      %1662 = vmatprep.subr.bf16.mxu0 0
      %1663 = vmatpush2.bf16.msra.mxu0 0
      %1664 = vmatprep.mubr.bf16.mxu0 0
      %1665 = vmatmul.mubr.bf16.gmra.mxu0 %v1612
      %v1666 = vpop.f32.mrf.mxu0
      %v1667 = vadd.f32 0.0, %v1666
      %v1668 = vpop.f32.mrf.mxu0
      %v1669 = vadd.f32 0.0, %v1668
      %v1670 = vpop.f32.mrf.mxu0
      %v1671 = vadd.f32 0.0, %v1670
      %v1672 = vpop.f32.mrf.mxu0
      %v1673 = vadd.f32 0.0, %v1672
      %1674 = vmatprep.mubr.bf16.mxu0 0
      %1675 = vmatmul.mubr.bf16.gmra.mxu0 %v1615
      %v1676 = vpop.f32.mrf.mxu0
      %v1677 = vadd.f32 0.0, %v1676
      %v1678 = vpop.f32.mrf.mxu0
      %v1679 = vadd.f32 0.0, %v1678
      %v1680 = vpop.f32.mrf.mxu0
      %v1681 = vadd.f32 0.0, %v1680
      %v1682 = vpop.f32.mrf.mxu0
      %v1683 = vadd.f32 0.0, %v1682
      %1684 = vmatprep.mubr.bf16.mxu0 0
      %1685 = vmatmul.mubr.bf16.gmra.mxu0 %v1618
      %v1686 = vpop.f32.mrf.mxu0
      %v1687 = vadd.f32 0.0, %v1686
      %v1688 = vpop.f32.mrf.mxu0
      %v1689 = vadd.f32 0.0, %v1688
      %v1690 = vpop.f32.mrf.mxu0
      %v1691 = vadd.f32 0.0, %v1690
      %v1692 = vpop.f32.mrf.mxu0
      %v1693 = vadd.f32 0.0, %v1692
      %1694 = vmatprep.mubr.bf16.mxu0 0
      %1695 = vmatmul.mubr.bf16.gmra.mxu0 %v1621
      %v1696 = vpop.f32.mrf.mxu0
      %v1697 = vadd.f32 0.0, %v1696
      %v1698 = vpop.f32.mrf.mxu0
      %v1699 = vadd.f32 0.0, %v1698
      %v1700 = vpop.f32.mrf.mxu0
      %v1701 = vadd.f32 0.0, %v1700
      %v1702 = vpop.f32.mrf.mxu0
      %v1703 = vadd.f32 0.0, %v1702
      %1704 = vdwg.mxu0
      %1705 = vmatprep.subr.bf16.mxu0 0
      %1706 = vmatpush1.bf16.msra.mxu0 0
      %1707 = vmatprep.subr.bf16.mxu0 0
      %1708 = vmatpush1.bf16.msra.mxu0 0
      %1709 = vmatprep.subr.bf16.mxu0 0
      %1710 = vmatpush1.bf16.msra.mxu0 0
      %1711 = vmatprep.subr.bf16.mxu0 0
      %1712 = vmatpush1.bf16.msra.mxu0 0
      %1713 = vmatprep.subr.bf16.mxu0 0
      %1714 = vmatpush1.bf16.msra.mxu0 0
      %1715 = vmatprep.subr.bf16.mxu0 0
      %1716 = vmatpush1.bf16.msra.mxu0 0
      %1717 = vmatprep.subr.bf16.mxu0 0
      %1718 = vmatpush1.bf16.msra.mxu0 0
      %1719 = vmatprep.subr.bf16.mxu0 0
      %1720 = vmatpush1.bf16.msra.mxu0 %v1630
      %1721 = vmatprep.subr.bf16.mxu0 0
      %1722 = vmatpush2.bf16.msra.mxu0 0
      %1723 = vmatprep.subr.bf16.mxu0 0
      %1724 = vmatpush2.bf16.msra.mxu0 0
      %1725 = vmatprep.subr.bf16.mxu0 0
      %1726 = vmatpush2.bf16.msra.mxu0 0
      %1727 = vmatprep.subr.bf16.mxu0 0
      %1728 = vmatpush2.bf16.msra.mxu0 0
      %1729 = vmatprep.subr.bf16.mxu0 0
      %1730 = vmatpush2.bf16.msra.mxu0 0
      %1731 = vmatprep.subr.bf16.mxu0 0
      %1732 = vmatpush2.bf16.msra.mxu0 0
      %1733 = vmatprep.subr.bf16.mxu0 0
      %1734 = vmatpush2.bf16.msra.mxu0 0
      %1735 = vmatprep.subr.bf16.mxu0 0
      %1736 = vmatpush2.bf16.msra.mxu0 0
      %1737 = vmatprep.mubr.bf16.mxu0 0
      %1738 = vmatmul.mubr.bf16.gmra.mxu0 %v1612
      %v1739 = vpop.f32.mrf.mxu0
      %v1740 = vadd.f32 0.0, %v1739
      %v1741 = vpop.f32.mrf.mxu0
      %v1742 = vpop.f32.mrf.mxu0
      %v1743 = vadd.f32 0.0, %v1742
      %v1744 = vpop.f32.mrf.mxu0
      %1745 = vmatprep.mubr.bf16.mxu0 0
      %1746 = vmatmul.mubr.bf16.gmra.mxu0 %v1615
      %v1747 = vpop.f32.mrf.mxu0
      %v1748 = vadd.f32 0.0, %v1747
      %v1749 = vpop.f32.mrf.mxu0
      %v1750 = vpop.f32.mrf.mxu0
      %v1751 = vadd.f32 0.0, %v1750
      %v1752 = vpop.f32.mrf.mxu0
      %1753 = vmatprep.mubr.bf16.mxu0 0
      %1754 = vmatmul.mubr.bf16.gmra.mxu0 %v1618
      %v1755 = vpop.f32.mrf.mxu0
      %v1756 = vadd.f32 0.0, %v1755
      %v1757 = vpop.f32.mrf.mxu0
      %v1758 = vpop.f32.mrf.mxu0
      %v1759 = vadd.f32 0.0, %v1758
      %v1760 = vpop.f32.mrf.mxu0
      %1761 = vmatprep.mubr.bf16.mxu0 0
      %1762 = vmatmul.mubr.bf16.gmra.mxu0 %v1621
      %v1763 = vpop.f32.mrf.mxu0
      %v1764 = vadd.f32 0.0, %v1763
      %v1765 = vpop.f32.mrf.mxu0
      %v1766 = vpop.f32.mrf.mxu0
      %v1767 = vadd.f32 0.0, %v1766
      %v1768 = vpop.f32.mrf.mxu0
      %1769 = vdwg.mxu0
      %v1770 = vadd.f32 %v1546, %v1667
      %v1771 = vadd.f32 %v1547, %v1669
      %v1772 = vadd.f32 %v1548, %v1740
      %v1773 = vadd.f32 %v1549, %v1671
      %v1774 = vadd.f32 %v1550, %v1673
      %v1775 = vadd.f32 %v1551, %v1743
      %v1776 = vadd.f32 %v1552, %v1677
      %v1777 = vadd.f32 %v1553, %v1679
      %v1778 = vadd.f32 %v1554, %v1748
      %v1779 = vadd.f32 %v1555, %v1681
      %v1780 = vadd.f32 %v1556, %v1683
      %v1781 = vadd.f32 %v1557, %v1751
      %v1782 = vadd.f32 %v1558, %v1687
      %v1783 = vadd.f32 %v1559, %v1689
      %v1784 = vadd.f32 %v1560, %v1756
      %v1785 = vadd.f32 %v1561, %v1691
      %v1786 = vadd.f32 %v1562, %v1693
      %v1787 = vadd.f32 %v1563, %v1759
      %v1788 = vadd.f32 %v1564, %v1697
      %v1789 = vadd.f32 %v1565, %v1699
      %v1790 = vadd.f32 %v1566, %v1764
      %v1791 = vadd.f32 %v1567, %v1701
      %v1792 = vadd.f32 %v1568, %v1703
      %v1793 = vadd.f32 %v1569, %v1767
      %s1794 = scalar_lea.vmem %s1, 224
      %v1795 = vld [vmem:[%s1794] sm:$0xf]
      %v1796 = vld [vmem:[%s1794 + $0x4] sm:$0xf]
      %v1797 = vld [vmem:[%s1794 + $0x8] sm:$0xf]
      %v1798 = vld [vmem:[%s1794 + $0xc] sm:$0xf]
      %v1799 = vld [vmem:[%s1794 + $0x10] sm:$0xf]
      %v1800 = vld [vmem:[%s1794 + $0x14] sm:$0xf]
      %v1801 = vld [vmem:[%s1794 + $0x18] sm:$0xf]
      %v1802 = vld [vmem:[%s1794 + $0x1c] sm:$0xf]
      %v1811 = vunpack.c.l.b16 %v1795
      %v1812 = vunpack.c.l.b16 %v1796
      %v1813 = vunpack.c.l.b16 %v1797
      %v1814 = vunpack.c.l.b16 %v1798
      %v1815 = vunpack.c.l.b16 %v1799
      %v1816 = vunpack.c.l.b16 %v1800
      %v1817 = vunpack.c.l.b16 %v1801
      %v1818 = vunpack.c.l.b16 %v1802
      %v1819 = vpack.c.b16 %v1812, %v1811
      %v1820 = vpack.c.b16 %v1814, %v1813
      %v1821 = vpack.c.b16 %v1816, %v1815
      %v1822 = vpack.c.b16 %v1818, %v1817
      %1823 = vrot.lane.b32.xlu0 %v312, 79
      %v1824 = vpop.permute.xlu0 %1823
      %1825 = vrot.lane.b32.xlu0 %v320, 79
      %v1826 = vpop.permute.xlu0 %1825
      %1827 = vrot.lane.b32.xlu0 %v319, 79
      %v1828 = vpop.permute.xlu0 %1827
      %1829 = vrot.lane.b32.xlu0 %v321, 79
      %v1830 = vpop.permute.xlu0 %1829
      %vm1831 = vcmask 646144
      %v1832 = vsel %vm1831, %v1824, %v1826
      %v1833 = vsel %vm1831, %v1826, %v1828
      %v1834 = vsel %vm1831, %v1828, %v1830
      %v1836 = vsel %vm334, %v1819, 0
      %v1839 = vsel %vm334, %v1820, 0
      %v1842 = vsel %vm334, %v1821, 0
      %v1845 = vsel %vm334, %v1822, 0
      %v1848 = vsel %vm347, %v1832, 0
      %v1851 = vsel %vm347, %v1833, 0
      %v1854 = vsel %vm347, %v1834, 0
      %1856 = vmatprep.subr.bf16.mxu0 0
      %1857 = vmatpush1.bf16.msra.mxu0 0
      %1858 = vmatprep.subr.bf16.mxu0 0
      %1859 = vmatpush1.bf16.msra.mxu0 0
      %1860 = vmatprep.subr.bf16.mxu0 0
      %1861 = vmatpush1.bf16.msra.mxu0 0
      %1862 = vmatprep.subr.bf16.mxu0 0
      %1863 = vmatpush1.bf16.msra.mxu0 0
      %1864 = vmatprep.subr.bf16.mxu0 0
      %1865 = vmatpush1.bf16.msra.mxu0 0
      %1866 = vmatprep.subr.bf16.mxu0 0
      %1867 = vmatpush1.bf16.msra.mxu0 0
      %1868 = vmatprep.subr.bf16.mxu0 0
      %1869 = vmatpush1.bf16.msra.mxu0 0
      %1870 = vmatprep.subr.bf16.mxu0 %v1851
      %1871 = vmatpush1.bf16.msra.mxu0 %v1848
      %1872 = vmatprep.subr.bf16.mxu0 0
      %1873 = vmatpush2.bf16.msra.mxu0 0
      %1874 = vmatprep.subr.bf16.mxu0 0
      %1875 = vmatpush2.bf16.msra.mxu0 0
      %1876 = vmatprep.subr.bf16.mxu0 0
      %1877 = vmatpush2.bf16.msra.mxu0 0
      %1878 = vmatprep.subr.bf16.mxu0 0
      %1879 = vmatpush2.bf16.msra.mxu0 0
      %1880 = vmatprep.subr.bf16.mxu0 0
      %1881 = vmatpush2.bf16.msra.mxu0 0
      %1882 = vmatprep.subr.bf16.mxu0 0
      %1883 = vmatpush2.bf16.msra.mxu0 0
      %1884 = vmatprep.subr.bf16.mxu0 0
      %1885 = vmatpush2.bf16.msra.mxu0 0
      %1886 = vmatprep.subr.bf16.mxu0 0
      %1887 = vmatpush2.bf16.msra.mxu0 0
      %1888 = vmatprep.mubr.bf16.mxu0 0
      %1889 = vmatmul.mubr.bf16.gmra.mxu0 %v1836
      %v1890 = vpop.f32.mrf.mxu0
      %v1891 = vadd.f32 0.0, %v1890
      %v1892 = vpop.f32.mrf.mxu0
      %v1893 = vadd.f32 0.0, %v1892
      %v1894 = vpop.f32.mrf.mxu0
      %v1895 = vadd.f32 0.0, %v1894
      %v1896 = vpop.f32.mrf.mxu0
      %v1897 = vadd.f32 0.0, %v1896
      %1898 = vmatprep.mubr.bf16.mxu0 0
      %1899 = vmatmul.mubr.bf16.gmra.mxu0 %v1839
      %v1900 = vpop.f32.mrf.mxu0
      %v1901 = vadd.f32 0.0, %v1900
      %v1902 = vpop.f32.mrf.mxu0
      %v1903 = vadd.f32 0.0, %v1902
      %v1904 = vpop.f32.mrf.mxu0
      %v1905 = vadd.f32 0.0, %v1904
      %v1906 = vpop.f32.mrf.mxu0
      %v1907 = vadd.f32 0.0, %v1906
      %1908 = vmatprep.mubr.bf16.mxu0 0
      %1909 = vmatmul.mubr.bf16.gmra.mxu0 %v1842
      %v1910 = vpop.f32.mrf.mxu0
      %v1911 = vadd.f32 0.0, %v1910
      %v1912 = vpop.f32.mrf.mxu0
      %v1913 = vadd.f32 0.0, %v1912
      %v1914 = vpop.f32.mrf.mxu0
      %v1915 = vadd.f32 0.0, %v1914
      %v1916 = vpop.f32.mrf.mxu0
      %v1917 = vadd.f32 0.0, %v1916
      %1918 = vmatprep.mubr.bf16.mxu0 0
      %1919 = vmatmul.mubr.bf16.gmra.mxu0 %v1845
      %v1920 = vpop.f32.mrf.mxu0
      %v1921 = vadd.f32 0.0, %v1920
      %v1922 = vpop.f32.mrf.mxu0
      %v1923 = vadd.f32 0.0, %v1922
      %v1924 = vpop.f32.mrf.mxu0
      %v1925 = vadd.f32 0.0, %v1924
      %v1926 = vpop.f32.mrf.mxu0
      %v1927 = vadd.f32 0.0, %v1926
      %1928 = vdwg.mxu0
      %1929 = vmatprep.subr.bf16.mxu0 0
      %1930 = vmatpush1.bf16.msra.mxu0 0
      %1931 = vmatprep.subr.bf16.mxu0 0
      %1932 = vmatpush1.bf16.msra.mxu0 0
      %1933 = vmatprep.subr.bf16.mxu0 0
      %1934 = vmatpush1.bf16.msra.mxu0 0
      %1935 = vmatprep.subr.bf16.mxu0 0
      %1936 = vmatpush1.bf16.msra.mxu0 0
      %1937 = vmatprep.subr.bf16.mxu0 0
      %1938 = vmatpush1.bf16.msra.mxu0 0
      %1939 = vmatprep.subr.bf16.mxu0 0
      %1940 = vmatpush1.bf16.msra.mxu0 0
      %1941 = vmatprep.subr.bf16.mxu0 0
      %1942 = vmatpush1.bf16.msra.mxu0 0
      %1943 = vmatprep.subr.bf16.mxu0 0
      %1944 = vmatpush1.bf16.msra.mxu0 %v1854
      %1945 = vmatprep.subr.bf16.mxu0 0
      %1946 = vmatpush2.bf16.msra.mxu0 0
      %1947 = vmatprep.subr.bf16.mxu0 0
      %1948 = vmatpush2.bf16.msra.mxu0 0
      %1949 = vmatprep.subr.bf16.mxu0 0
      %1950 = vmatpush2.bf16.msra.mxu0 0
      %1951 = vmatprep.subr.bf16.mxu0 0
      %1952 = vmatpush2.bf16.msra.mxu0 0
      %1953 = vmatprep.subr.bf16.mxu0 0
      %1954 = vmatpush2.bf16.msra.mxu0 0
      %1955 = vmatprep.subr.bf16.mxu0 0
      %1956 = vmatpush2.bf16.msra.mxu0 0
      %1957 = vmatprep.subr.bf16.mxu0 0
      %1958 = vmatpush2.bf16.msra.mxu0 0
      %1959 = vmatprep.subr.bf16.mxu0 0
      %1960 = vmatpush2.bf16.msra.mxu0 0
      %1961 = vmatprep.mubr.bf16.mxu0 0
      %1962 = vmatmul.mubr.bf16.gmra.mxu0 %v1836
      %v1963 = vpop.f32.mrf.mxu0
      %v1964 = vadd.f32 0.0, %v1963
      %v1965 = vpop.f32.mrf.mxu0
      %v1966 = vpop.f32.mrf.mxu0
      %v1967 = vadd.f32 0.0, %v1966
      %v1968 = vpop.f32.mrf.mxu0
      %1969 = vmatprep.mubr.bf16.mxu0 0
      %1970 = vmatmul.mubr.bf16.gmra.mxu0 %v1839
      %v1971 = vpop.f32.mrf.mxu0
      %v1972 = vadd.f32 0.0, %v1971
      %v1973 = vpop.f32.mrf.mxu0
      %v1974 = vpop.f32.mrf.mxu0
      %v1975 = vadd.f32 0.0, %v1974
      %v1976 = vpop.f32.mrf.mxu0
      %1977 = vmatprep.mubr.bf16.mxu0 0
      %1978 = vmatmul.mubr.bf16.gmra.mxu0 %v1842
      %v1979 = vpop.f32.mrf.mxu0
      %v1980 = vadd.f32 0.0, %v1979
      %v1981 = vpop.f32.mrf.mxu0
      %v1982 = vpop.f32.mrf.mxu0
      %v1983 = vadd.f32 0.0, %v1982
      %v1984 = vpop.f32.mrf.mxu0
      %1985 = vmatprep.mubr.bf16.mxu0 0
      %1986 = vmatmul.mubr.bf16.gmra.mxu0 %v1845
      %v1987 = vpop.f32.mrf.mxu0
      %v1988 = vadd.f32 0.0, %v1987
      %v1989 = vpop.f32.mrf.mxu0
      %v1990 = vpop.f32.mrf.mxu0
      %v1991 = vadd.f32 0.0, %v1990
      %v1992 = vpop.f32.mrf.mxu0
      %1993 = vdwg.mxu0
      %v1994 = vadd.f32 %v1770, %v1891
      %v1995 = vadd.f32 %v1771, %v1893
      %v1996 = vadd.f32 %v1772, %v1964
      %v1997 = vadd.f32 %v1773, %v1895
      %v1998 = vadd.f32 %v1774, %v1897
      %v1999 = vadd.f32 %v1775, %v1967
      %v2000 = vadd.f32 %v1776, %v1901
      %v2001 = vadd.f32 %v1777, %v1903
      %v2002 = vadd.f32 %v1778, %v1972
      %v2003 = vadd.f32 %v1779, %v1905
      %v2004 = vadd.f32 %v1780, %v1907
      %v2005 = vadd.f32 %v1781, %v1975
      %v2006 = vadd.f32 %v1782, %v1911
      %v2007 = vadd.f32 %v1783, %v1913
      %v2008 = vadd.f32 %v1784, %v1980
      %v2009 = vadd.f32 %v1785, %v1915
      %v2010 = vadd.f32 %v1786, %v1917
      %v2011 = vadd.f32 %v1787, %v1983
      %v2012 = vadd.f32 %v1788, %v1921
      %v2013 = vadd.f32 %v1789, %v1923
      %v2014 = vadd.f32 %v1790, %v1988
      %v2015 = vadd.f32 %v1791, %v1925
      %v2016 = vadd.f32 %v1792, %v1927
      %v2017 = vadd.f32 %v1793, %v1991
      %s2018 = scalar_lea.vmem %s1, 256
      %v2019 = vld [vmem:[%s2018] sm:$0xf]
      %v2020 = vld [vmem:[%s2018 + $0x4] sm:$0xf]
      %v2021 = vld [vmem:[%s2018 + $0x8] sm:$0xf]
      %v2022 = vld [vmem:[%s2018 + $0xc] sm:$0xf]
      %v2023 = vld [vmem:[%s2018 + $0x10] sm:$0xf]
      %v2024 = vld [vmem:[%s2018 + $0x14] sm:$0xf]
      %v2025 = vld [vmem:[%s2018 + $0x18] sm:$0xf]
      %v2026 = vld [vmem:[%s2018 + $0x1c] sm:$0xf]
      %v2035 = vunpack.c.l.b16 %v2019
      %v2036 = vunpack.c.l.b16 %v2020
      %v2037 = vunpack.c.l.b16 %v2021
      %v2038 = vunpack.c.l.b16 %v2022
      %v2039 = vunpack.c.l.b16 %v2023
      %v2040 = vunpack.c.l.b16 %v2024
      %v2041 = vunpack.c.l.b16 %v2025
      %v2042 = vunpack.c.l.b16 %v2026
      %v2043 = vpack.c.b16 %v2036, %v2035
      %v2044 = vpack.c.b16 %v2038, %v2037
      %v2045 = vpack.c.b16 %v2040, %v2039
      %v2046 = vpack.c.b16 %v2042, %v2041
      %2047 = vrot.lane.b32.xlu0 %v312, 78
      %v2048 = vpop.permute.xlu0 %2047
      %2049 = vrot.lane.b32.xlu0 %v320, 78
      %v2050 = vpop.permute.xlu0 %2049
      %2051 = vrot.lane.b32.xlu0 %v319, 78
      %v2052 = vpop.permute.xlu0 %2051
      %2053 = vrot.lane.b32.xlu0 %v321, 78
      %v2054 = vpop.permute.xlu0 %2053
      %vm2055 = vcmask 637952
      %v2056 = vsel %vm2055, %v2048, %v2050
      %v2057 = vsel %vm2055, %v2050, %v2052
      %v2058 = vsel %vm2055, %v2052, %v2054
      %v2060 = vsel %vm334, %v2043, 0
      %v2063 = vsel %vm334, %v2044, 0
      %v2066 = vsel %vm334, %v2045, 0
      %v2069 = vsel %vm334, %v2046, 0
      %v2072 = vsel %vm347, %v2056, 0
      %v2075 = vsel %vm347, %v2057, 0
      %v2078 = vsel %vm347, %v2058, 0
      %2080 = vmatprep.subr.bf16.mxu0 0
      %2081 = vmatpush1.bf16.msra.mxu0 0
      %2082 = vmatprep.subr.bf16.mxu0 0
      %2083 = vmatpush1.bf16.msra.mxu0 0
      %2084 = vmatprep.subr.bf16.mxu0 0
      %2085 = vmatpush1.bf16.msra.mxu0 0
      %2086 = vmatprep.subr.bf16.mxu0 0
      %2087 = vmatpush1.bf16.msra.mxu0 0
      %2088 = vmatprep.subr.bf16.mxu0 0
      %2089 = vmatpush1.bf16.msra.mxu0 0
      %2090 = vmatprep.subr.bf16.mxu0 0
      %2091 = vmatpush1.bf16.msra.mxu0 0
      %2092 = vmatprep.subr.bf16.mxu0 0
      %2093 = vmatpush1.bf16.msra.mxu0 0
      %2094 = vmatprep.subr.bf16.mxu0 %v2075
      %2095 = vmatpush1.bf16.msra.mxu0 %v2072
      %2096 = vmatprep.subr.bf16.mxu0 0
      %2097 = vmatpush2.bf16.msra.mxu0 0
      %2098 = vmatprep.subr.bf16.mxu0 0
      %2099 = vmatpush2.bf16.msra.mxu0 0
      %2100 = vmatprep.subr.bf16.mxu0 0
      %2101 = vmatpush2.bf16.msra.mxu0 0
      %2102 = vmatprep.subr.bf16.mxu0 0
      %2103 = vmatpush2.bf16.msra.mxu0 0
      %2104 = vmatprep.subr.bf16.mxu0 0
      %2105 = vmatpush2.bf16.msra.mxu0 0
      %2106 = vmatprep.subr.bf16.mxu0 0
      %2107 = vmatpush2.bf16.msra.mxu0 0
      %2108 = vmatprep.subr.bf16.mxu0 0
      %2109 = vmatpush2.bf16.msra.mxu0 0
      %2110 = vmatprep.subr.bf16.mxu0 0
      %2111 = vmatpush2.bf16.msra.mxu0 0
      %2112 = vmatprep.mubr.bf16.mxu0 0
      %2113 = vmatmul.mubr.bf16.gmra.mxu0 %v2060
      %v2114 = vpop.f32.mrf.mxu0
      %v2115 = vadd.f32 0.0, %v2114
      %v2116 = vpop.f32.mrf.mxu0
      %v2117 = vadd.f32 0.0, %v2116
      %v2118 = vpop.f32.mrf.mxu0
      %v2119 = vadd.f32 0.0, %v2118
      %v2120 = vpop.f32.mrf.mxu0
      %v2121 = vadd.f32 0.0, %v2120
      %2122 = vmatprep.mubr.bf16.mxu0 0
      %2123 = vmatmul.mubr.bf16.gmra.mxu0 %v2063
      %v2124 = vpop.f32.mrf.mxu0
      %v2125 = vadd.f32 0.0, %v2124
      %v2126 = vpop.f32.mrf.mxu0
      %v2127 = vadd.f32 0.0, %v2126
      %v2128 = vpop.f32.mrf.mxu0
      %v2129 = vadd.f32 0.0, %v2128
      %v2130 = vpop.f32.mrf.mxu0
      %v2131 = vadd.f32 0.0, %v2130
      %2132 = vmatprep.mubr.bf16.mxu0 0
      %2133 = vmatmul.mubr.bf16.gmra.mxu0 %v2066
      %v2134 = vpop.f32.mrf.mxu0
      %v2135 = vadd.f32 0.0, %v2134
      %v2136 = vpop.f32.mrf.mxu0
      %v2137 = vadd.f32 0.0, %v2136
      %v2138 = vpop.f32.mrf.mxu0
      %v2139 = vadd.f32 0.0, %v2138
      %v2140 = vpop.f32.mrf.mxu0
      %v2141 = vadd.f32 0.0, %v2140
      %2142 = vmatprep.mubr.bf16.mxu0 0
      %2143 = vmatmul.mubr.bf16.gmra.mxu0 %v2069
      %v2144 = vpop.f32.mrf.mxu0
      %v2145 = vadd.f32 0.0, %v2144
      %v2146 = vpop.f32.mrf.mxu0
      %v2147 = vadd.f32 0.0, %v2146
      %v2148 = vpop.f32.mrf.mxu0
      %v2149 = vadd.f32 0.0, %v2148
      %v2150 = vpop.f32.mrf.mxu0
      %v2151 = vadd.f32 0.0, %v2150
      %2152 = vdwg.mxu0
      %2153 = vmatprep.subr.bf16.mxu0 0
      %2154 = vmatpush1.bf16.msra.mxu0 0
      %2155 = vmatprep.subr.bf16.mxu0 0
      %2156 = vmatpush1.bf16.msra.mxu0 0
      %2157 = vmatprep.subr.bf16.mxu0 0
      %2158 = vmatpush1.bf16.msra.mxu0 0
      %2159 = vmatprep.subr.bf16.mxu0 0
      %2160 = vmatpush1.bf16.msra.mxu0 0
      %2161 = vmatprep.subr.bf16.mxu0 0
      %2162 = vmatpush1.bf16.msra.mxu0 0
      %2163 = vmatprep.subr.bf16.mxu0 0
      %2164 = vmatpush1.bf16.msra.mxu0 0
      %2165 = vmatprep.subr.bf16.mxu0 0
      %2166 = vmatpush1.bf16.msra.mxu0 0
      %2167 = vmatprep.subr.bf16.mxu0 0
      %2168 = vmatpush1.bf16.msra.mxu0 %v2078
      %2169 = vmatprep.subr.bf16.mxu0 0
      %2170 = vmatpush2.bf16.msra.mxu0 0
      %2171 = vmatprep.subr.bf16.mxu0 0
      %2172 = vmatpush2.bf16.msra.mxu0 0
      %2173 = vmatprep.subr.bf16.mxu0 0
      %2174 = vmatpush2.bf16.msra.mxu0 0
      %2175 = vmatprep.subr.bf16.mxu0 0
      %2176 = vmatpush2.bf16.msra.mxu0 0
      %2177 = vmatprep.subr.bf16.mxu0 0
      %2178 = vmatpush2.bf16.msra.mxu0 0
      %2179 = vmatprep.subr.bf16.mxu0 0
      %2180 = vmatpush2.bf16.msra.mxu0 0
      %2181 = vmatprep.subr.bf16.mxu0 0
      %2182 = vmatpush2.bf16.msra.mxu0 0
      %2183 = vmatprep.subr.bf16.mxu0 0
      %2184 = vmatpush2.bf16.msra.mxu0 0
      %2185 = vmatprep.mubr.bf16.mxu0 0
      %2186 = vmatmul.mubr.bf16.gmra.mxu0 %v2060
      %v2187 = vpop.f32.mrf.mxu0
      %v2188 = vadd.f32 0.0, %v2187
      %v2189 = vpop.f32.mrf.mxu0
      %v2190 = vpop.f32.mrf.mxu0
      %v2191 = vadd.f32 0.0, %v2190
      %v2192 = vpop.f32.mrf.mxu0
      %2193 = vmatprep.mubr.bf16.mxu0 0
      %2194 = vmatmul.mubr.bf16.gmra.mxu0 %v2063
      %v2195 = vpop.f32.mrf.mxu0
      %v2196 = vadd.f32 0.0, %v2195
      %v2197 = vpop.f32.mrf.mxu0
      %v2198 = vpop.f32.mrf.mxu0
      %v2199 = vadd.f32 0.0, %v2198
      %v2200 = vpop.f32.mrf.mxu0
      %2201 = vmatprep.mubr.bf16.mxu0 0
      %2202 = vmatmul.mubr.bf16.gmra.mxu0 %v2066
      %v2203 = vpop.f32.mrf.mxu0
      %v2204 = vadd.f32 0.0, %v2203
      %v2205 = vpop.f32.mrf.mxu0
      %v2206 = vpop.f32.mrf.mxu0
      %v2207 = vadd.f32 0.0, %v2206
      %v2208 = vpop.f32.mrf.mxu0
      %2209 = vmatprep.mubr.bf16.mxu0 0
      %2210 = vmatmul.mubr.bf16.gmra.mxu0 %v2069
      %v2211 = vpop.f32.mrf.mxu0
      %v2212 = vadd.f32 0.0, %v2211
      %v2213 = vpop.f32.mrf.mxu0
      %v2214 = vpop.f32.mrf.mxu0
      %v2215 = vadd.f32 0.0, %v2214
      %v2216 = vpop.f32.mrf.mxu0
      %2217 = vdwg.mxu0
      %v2218 = vadd.f32 %v1994, %v2115
      %v2219 = vadd.f32 %v1995, %v2117
      %v2220 = vadd.f32 %v1996, %v2188
      %v2221 = vadd.f32 %v1997, %v2119
      %v2222 = vadd.f32 %v1998, %v2121
      %v2223 = vadd.f32 %v1999, %v2191
      %v2224 = vadd.f32 %v2000, %v2125
      %v2225 = vadd.f32 %v2001, %v2127
      %v2226 = vadd.f32 %v2002, %v2196
      %v2227 = vadd.f32 %v2003, %v2129
      %v2228 = vadd.f32 %v2004, %v2131
      %v2229 = vadd.f32 %v2005, %v2199
      %v2230 = vadd.f32 %v2006, %v2135
      %v2231 = vadd.f32 %v2007, %v2137
      %v2232 = vadd.f32 %v2008, %v2204
      %v2233 = vadd.f32 %v2009, %v2139
      %v2234 = vadd.f32 %v2010, %v2141
      %v2235 = vadd.f32 %v2011, %v2207
      %v2236 = vadd.f32 %v2012, %v2145
      %v2237 = vadd.f32 %v2013, %v2147
      %v2238 = vadd.f32 %v2014, %v2212
      %v2239 = vadd.f32 %v2015, %v2149
      %v2240 = vadd.f32 %v2016, %v2151
      %v2241 = vadd.f32 %v2017, %v2215
      %v2242 = vld [vmem:[%s2] sm:$0xff]
      %v2243 = vld [vmem:[%s2 + $0x8] sm:$0xff]
      %v2244 = vld [vmem:[%s2 + $0x10] sm:$0xff]
      %v2245 = vld [vmem:[%s2 + $0x18] sm:$0xff]
      %v2246 = vld [vmem:[%s2 + $0x20] sm:$0xff]
      %v2247 = vld [vmem:[%s2 + $0x28] sm:$0xff]
      %v2248 = vld [vmem:[%s2 + $0x30] sm:$0xff]
      %v2249 = vld [vmem:[%s2 + $0x38] sm:$0xff]
      %2251 = vset.pattern.permute.xlu0 0
      %2252 = vperm.xlu0 %2251, %v2242
      %v2253 = vpop.permute.xlu0 %2252
      %2256 = vset.pattern.permute.xlu0 0
      %2257 = vperm.xlu0 %2256, %v2243
      %v2258 = vpop.permute.xlu0 %2257
      %2261 = vset.pattern.permute.xlu0 0
      %2262 = vperm.xlu0 %2261, %v2244
      %v2263 = vpop.permute.xlu0 %2262
      %2266 = vset.pattern.permute.xlu0 0
      %2267 = vperm.xlu0 %2266, %v2245
      %v2268 = vpop.permute.xlu0 %2267
      %2271 = vset.pattern.permute.xlu0 0
      %2272 = vperm.xlu0 %2271, %v2246
      %v2273 = vpop.permute.xlu0 %2272
      %2276 = vset.pattern.permute.xlu0 0
      %2277 = vperm.xlu0 %2276, %v2247
      %v2278 = vpop.permute.xlu0 %2277
      %2281 = vset.pattern.permute.xlu0 0
      %2282 = vperm.xlu0 %2281, %v2248
      %v2283 = vpop.permute.xlu0 %2282
      %2286 = vset.pattern.permute.xlu0 0
      %2287 = vperm.xlu0 %2286, %v2249
      %v2288 = vpop.permute.xlu0 %2287
      %v2290 = vadd.f32 %v2218, %v2253
      %v2291 = vadd.f32 %v2219, %v2253
      %v2292 = vadd.f32 %v2220, %v2253
      %v2293 = vadd.f32 %v2221, %v2258
      %v2294 = vadd.f32 %v2222, %v2258
      %v2295 = vadd.f32 %v2223, %v2258
      %v2296 = vadd.f32 %v2224, %v2263
      %v2297 = vadd.f32 %v2225, %v2263
      %v2298 = vadd.f32 %v2226, %v2263
      %v2299 = vadd.f32 %v2227, %v2268
      %v2300 = vadd.f32 %v2228, %v2268
      %v2301 = vadd.f32 %v2229, %v2268
      %v2302 = vadd.f32 %v2230, %v2273
      %v2303 = vadd.f32 %v2231, %v2273
      %v2304 = vadd.f32 %v2232, %v2273
      %v2305 = vadd.f32 %v2233, %v2278
      %v2306 = vadd.f32 %v2234, %v2278
      %v2307 = vadd.f32 %v2235, %v2278
      %v2308 = vadd.f32 %v2236, %v2283
      %v2309 = vadd.f32 %v2237, %v2283
      %v2310 = vadd.f32 %v2238, %v2283
      %v2311 = vadd.f32 %v2239, %v2288
      %v2312 = vadd.f32 %v2240, %v2288
      %v2313 = vadd.f32 %v2241, %v2288
      %v2314 = vmax.f32 %v2290, 0.0
      %v2315 = vmax.f32 %v2291, 0.0
      %v2316 = vmax.f32 %v2292, 0.0
      %v2317 = vmax.f32 %v2293, 0.0
      %v2318 = vmax.f32 %v2294, 0.0
      %v2319 = vmax.f32 %v2295, 0.0
      %v2320 = vmax.f32 %v2296, 0.0
      %v2321 = vmax.f32 %v2297, 0.0
      %v2322 = vmax.f32 %v2298, 0.0
      %v2323 = vmax.f32 %v2299, 0.0
      %v2324 = vmax.f32 %v2300, 0.0
      %v2325 = vmax.f32 %v2301, 0.0
      %v2326 = vmax.f32 %v2302, 0.0
      %v2327 = vmax.f32 %v2303, 0.0
      %v2328 = vmax.f32 %v2304, 0.0
      %v2329 = vmax.f32 %v2305, 0.0
      %v2330 = vmax.f32 %v2306, 0.0
      %v2331 = vmax.f32 %v2307, 0.0
      %v2332 = vmax.f32 %v2308, 0.0
      %v2333 = vmax.f32 %v2309, 0.0
      %v2334 = vmax.f32 %v2310, 0.0
      %v2335 = vmax.f32 %v2311, 0.0
      %v2336 = vmax.f32 %v2312, 0.0
      %v2337 = vmax.f32 %v2313, 0.0
      %v2338 = vpack.c.bf16 %v2317, %v2314
      %v2339 = vpack.c.bf16 %v2318, %v2315
      %v2340 = vpack.c.bf16 %v2319, %v2316
      %v2341 = vpack.c.bf16 %v2323, %v2320
      %v2342 = vpack.c.bf16 %v2324, %v2321
      %v2343 = vpack.c.bf16 %v2325, %v2322
      %v2344 = vpack.c.bf16 %v2329, %v2326
      %v2345 = vpack.c.bf16 %v2330, %v2327
      %v2346 = vpack.c.bf16 %v2331, %v2328
      %v2347 = vpack.c.bf16 %v2335, %v2332
      %v2348 = vpack.c.bf16 %v2336, %v2333
      %v2349 = vpack.c.bf16 %v2337, %v2334
      %v2350 = vld [vmem:[%s3] sm:$0xf]
      %v2351 = vld [vmem:[%s3 + $0x4] sm:$0xf]
      %v2352 = vld [vmem:[%s4] sm:$0xff]
      %v2353 = vld [vmem:[%s4 + $0x8] sm:$0xff]
      %2355 = vset.pattern.permute.xlu0 0
      %2356 = vperm.xlu0 %2355, %v2352
      %v2357 = vpop.permute.xlu0 %2356
      %2360 = vset.pattern.permute.xlu0 0
      %2361 = vperm.xlu0 %2360, %v2353
      %v2362 = vpop.permute.xlu0 %2361
      %v2366 = vunpack.c.l.b16 %v2350
      %v2367 = vunpack.c.l.b16 %v2351
      %v2368 = vpack.c.b16 %v2367, %v2366
      %vm2369 = vcmask 523264
      %v2371 = vsel %vm2369, %v2368, 0
      %2373 = vmatprep.subr.bf16.mxu0 0
      %2374 = vmatpush1.bf16.msra.mxu0 0
      %2375 = vmatprep.subr.bf16.mxu0 0
      %2376 = vmatpush1.bf16.msra.mxu0 0
      %2377 = vmatprep.subr.bf16.mxu0 0
      %2378 = vmatpush1.bf16.msra.mxu0 0
      %2379 = vmatprep.subr.bf16.mxu0 0
      %2380 = vmatpush1.bf16.msra.mxu0 0
      %2381 = vmatprep.subr.bf16.mxu0 %v2348
      %2382 = vmatpush1.bf16.msra.mxu0 %v2347
      %2383 = vmatprep.subr.bf16.mxu0 %v2345
      %2384 = vmatpush1.bf16.msra.mxu0 %v2344
      %2385 = vmatprep.subr.bf16.mxu0 %v2342
      %2386 = vmatpush1.bf16.msra.mxu0 %v2341
      %2387 = vmatprep.subr.bf16.mxu0 %v2339
      %2388 = vmatpush1.bf16.msra.mxu0 %v2338
      %2389 = vmatprep.subr.bf16.mxu0 0
      %2390 = vmatpush2.bf16.msra.mxu0 0
      %2391 = vmatprep.subr.bf16.mxu0 0
      %2392 = vmatpush2.bf16.msra.mxu0 0
      %2393 = vmatprep.subr.bf16.mxu0 0
      %2394 = vmatpush2.bf16.msra.mxu0 0
      %2395 = vmatprep.subr.bf16.mxu0 0
      %2396 = vmatpush2.bf16.msra.mxu0 0
      %2397 = vmatprep.subr.bf16.mxu0 0
      %2398 = vmatpush2.bf16.msra.mxu0 0
      %2399 = vmatprep.subr.bf16.mxu0 0
      %2400 = vmatpush2.bf16.msra.mxu0 0
      %2401 = vmatprep.subr.bf16.mxu0 0
      %2402 = vmatpush2.bf16.msra.mxu0 0
      %2403 = vmatprep.subr.bf16.mxu0 0
      %2404 = vmatpush2.bf16.msra.mxu0 0
      %2405 = vmatprep.mubr.bf16.mxu0 0
      %2406 = vmatmul.mubr.bf16.gmra.mxu0 %v2371
      %v2407 = vpop.f32.mrf.mxu0
      %v2408 = vadd.f32 %v2357, %v2407
      %v2409 = vpop.f32.mrf.mxu0
      %v2410 = vadd.f32 %v2357, %v2409
      %v2411 = vpop.f32.mrf.mxu0
      %v2412 = vadd.f32 %v2362, %v2411
      %v2413 = vpop.f32.mrf.mxu0
      %v2414 = vadd.f32 %v2362, %v2413
      %2415 = vdwg.mxu0
      %2416 = vmatprep.subr.bf16.mxu0 0
      %2417 = vmatpush1.bf16.msra.mxu0 0
      %2418 = vmatprep.subr.bf16.mxu0 0
      %2419 = vmatpush1.bf16.msra.mxu0 0
      %2420 = vmatprep.subr.bf16.mxu0 0
      %2421 = vmatpush1.bf16.msra.mxu0 0
      %2422 = vmatprep.subr.bf16.mxu0 0
      %2423 = vmatpush1.bf16.msra.mxu0 0
      %2424 = vmatprep.subr.bf16.mxu0 0
      %2425 = vmatpush1.bf16.msra.mxu0 %v2349
      %2426 = vmatprep.subr.bf16.mxu0 0
      %2427 = vmatpush1.bf16.msra.mxu0 %v2346
      %2428 = vmatprep.subr.bf16.mxu0 0
      %2429 = vmatpush1.bf16.msra.mxu0 %v2343
      %2430 = vmatprep.subr.bf16.mxu0 0
      %2431 = vmatpush1.bf16.msra.mxu0 %v2340
      %2432 = vmatprep.subr.bf16.mxu0 0
      %2433 = vmatpush2.bf16.msra.mxu0 0
      %2434 = vmatprep.subr.bf16.mxu0 0
      %2435 = vmatpush2.bf16.msra.mxu0 0
      %2436 = vmatprep.subr.bf16.mxu0 0
      %2437 = vmatpush2.bf16.msra.mxu0 0
      %2438 = vmatprep.subr.bf16.mxu0 0
      %2439 = vmatpush2.bf16.msra.mxu0 0
      %2440 = vmatprep.subr.bf16.mxu0 0
      %2441 = vmatpush2.bf16.msra.mxu0 0
      %2442 = vmatprep.subr.bf16.mxu0 0
      %2443 = vmatpush2.bf16.msra.mxu0 0
      %2444 = vmatprep.subr.bf16.mxu0 0
      %2445 = vmatpush2.bf16.msra.mxu0 0
      %2446 = vmatprep.subr.bf16.mxu0 0
      %2447 = vmatpush2.bf16.msra.mxu0 0
      %2448 = vmatprep.mubr.bf16.mxu0 0
      %2449 = vmatmul.mubr.bf16.gmra.mxu0 %v2371
      %v2450 = vpop.f32.mrf.mxu0
      %v2451 = vadd.f32 %v2357, %v2450
      %v2452 = vpop.f32.mrf.mxu0
      %v2453 = vpop.f32.mrf.mxu0
      %v2454 = vadd.f32 %v2362, %v2453
      %v2455 = vpop.f32.mrf.mxu0
      %2456 = vdwg.mxu0
      %2457 = vst [vmem:[%s259] sm:$0xff] %v2408
      %2458 = vst [vmem:[%s259 + $0x8] sm:$0xff] %v2410
      %2459 = vst [vmem:[%s259 + $0x10] sm:$0xff] %v2451
      %2460 = vst [vmem:[%s264] sm:$0xff] %v2412
      %2461 = vst [vmem:[%s264 + $0x8] sm:$0xff] %v2414
      %2462 = vst [vmem:[%s264 + $0x10] sm:$0xff] %v2454
      %p2463 = scmp.lt.s32.totalorder %s18, 1
      %s2464 = scalar_select %p2463, %s18, 1
      %s2465 = smul.addr %s2464, 3
      %s2466 = smul.addr %s2465, 8
      %s2467 = scalar_lea.vmem %s5, %s2466
      %p2468 = scmp.lt.s32.totalorder %s18, 1
      %s2469 = scalar_select %p2468, %s18, 1
      %s2470 = smul.addr %s2469, 3
      %s2471 = smul.addr %s2470, 8
      %s2472 = scalar_lea.vmem %s6, %s2471
      // Predicated region
      $region41: #{mean_teacher_forward.1} parent=39 // pred_check
        %p2473 = pneg %p146
      $region42: #{mean_teacher_forward.1} parent=39 // pred_check_branch
        %2475 = sbr.rel (%p2473) target = $region44
      $region43: #{mean_teacher_forward.1} parent=39 // pred_region
        _
      $region44: #{mean_teacher_forward.1} parent=39 // pred_fallthru
        _
      // Predicated region
      $region45: #{mean_teacher_forward.1} parent=39 // pred_check
        %p2476 = pneg %p172
      $region46: #{mean_teacher_forward.1} parent=39 // pred_check_branch
        %2478 = sbr.rel (%p2476) target = $region48
      $region47: #{mean_teacher_forward.1} parent=39 // pred_region
        _
      $region48: #{mean_teacher_forward.1} parent=39 // pred_fallthru
        _
    $region40: #{mean_teacher_forward.1} parent=5 // pred_fallthru
      _
    %p2479 = scmp.le.s32.totalorder 2, %s13
    // Predicated region
    $region49: #{mean_teacher_forward.1} parent=5 // pred_check
      %p2480 = pneg %p2479
    $region50: #{mean_teacher_forward.1} parent=5 // pred_check_branch
      %2482 = sbr.rel (%p2480) target = $region52
    $region51: #{mean_teacher_forward.1} parent=5 // pred_region
      %s2483 = ssub.s32 %s13, 2
      // Predicated region
      $region53: #{mean_teacher_forward.1} parent=51 // pred_check
        %p2484 = pneg %p152
      $region54: #{mean_teacher_forward.1} parent=51 // pred_check_branch
        %2486 = sbr.rel (%p2484) target = $region56
      $region55: #{mean_teacher_forward.1} parent=51 // pred_region
        %p2487 = scmp.lt.s32.totalorder %s19, 1
        %s2488 = scalar_select %p2487, %s19, 1
        %s2489 = smul.addr %s2488, 3
        %s2490 = smul.addr %s2489, 8
        %s2491 = scalar_lea.vmem %s5, %s2490
      $region56: #{mean_teacher_forward.1} parent=51 // pred_fallthru
        _
      // Predicated region
      $region57: #{mean_teacher_forward.1} parent=51 // pred_check
        %p2492 = pneg %p178
      $region58: #{mean_teacher_forward.1} parent=51 // pred_check_branch
        %2494 = sbr.rel (%p2492) target = $region60
      $region59: #{mean_teacher_forward.1} parent=51 // pred_region
        %p2495 = scmp.lt.s32.totalorder %s19, 1
        %s2496 = scalar_select %p2495, %s19, 1
        %s2497 = smul.addr %s2496, 3
        %s2498 = smul.addr %s2497, 8
        %s2499 = scalar_lea.vmem %s6, %s2498
      $region60: #{mean_teacher_forward.1} parent=51 // pred_fallthru
        _
    $region52: #{mean_teacher_forward.1} parent=5 // pred_fallthru
      _
  $region6: #{mean_teacher_forward.1} parent=0 // loop_footer
    %s17 = sadd.s32 1, %s13
  $region7: #{mean_teacher_forward.1} parent=0 // loop_footer_branch
    %12 = sbr.rel target = $region3
  $region8: #{mean_teacher_forward.1} parent=0 // loop_exit
    _

</llo_original>
